<compile_context>
chip_gen: v6e
topology: v6e:2x2x1
jax: 0.10.0
libtpu: 0.0.40
codegen_flags: <defaults>
</compile_context>

<pallas_src>
import functools
import math

import jax
import jax.numpy as jnp
from jax.experimental import pallas as pl
from jax.experimental.pallas import tpu as pltpu


# ----------------------------- kernel helpers -------------------------------

def _layer_norm(x, gamma, beta, eps=1e-6):
    # x: (S, D) f32; gamma/beta: (1, D) f32 — statistics kept in f32.
    mean = jnp.mean(x, axis=-1, keepdims=True)
    var = jnp.mean((x - mean) ** 2, axis=-1, keepdims=True)
    return (x - mean) * jax.lax.rsqrt(var + eps) * gamma + beta


# ------------------------------- the kernel ---------------------------------

def _encoder_layer_kernel(heads, x_ref, bias_ref,
                          ln1_g, ln1_b, w_qkv, b_qkv, wo, bo,
                          ln2_g, ln2_b, w1, b1, w2, b2,
                          out_ref):
    f32, bf16 = jnp.float32, jnp.bfloat16

    x = x_ref[0].astype(f32)                      # (S, D)
    S, D = x.shape
    dh = D // heads
    bias = bias_ref[0]                            # (Qm, S) additive f32 mask

    # ---- pre-attention LayerNorm (f32 statistics) ----
    xn = _layer_norm(x, ln1_g[...], ln1_b[...])

    # ---- fused Q/K/V projection: one lane-dense (S,D)@(D,3D) MXU pass ----
    # (1/sqrt(dh) is already folded into the Q columns/bias on the host.)
    qkv = jnp.dot(xn.astype(bf16), w_qkv[...],
                  preferred_element_type=f32) + b_qkv[...]           # (S, 3D)

    # ---- attention, one head at a time ----
    # Only one (S,S) f32 score block is live at any point (vs. (H,S,S)); the
    # per-head score matmul is lane-dense in its output (width S) and the PV
    # width dh is inherent to MHA regardless of head batching.
    ctx_parts = []
    for h in range(heads):
        lo = h * dh
        qh = qkv[:, lo:lo + dh].astype(bf16)                         # (S, dh)
        kh = qkv[:, D + lo:D + lo + dh].astype(bf16)
        vh = qkv[:, 2 * D + lo:2 * D + lo + dh].astype(bf16)

        s = jnp.einsum('qd,kd->qk', qh, kh,
                       preferred_element_type=f32)                   # (S, S)
        s = s + bias                                                 # additive mask
        m = jnp.max(s, axis=-1, keepdims=True)                       # f32 stats
        p = jnp.exp(s - m)
        denom = jnp.sum(p, axis=-1, keepdims=True)
        attn = p * pl.reciprocal(denom, approx=True)                 # EUP slot
        ctx_parts.append(jnp.dot(attn.astype(bf16), vh,
                                 preferred_element_type=f32))        # (S, dh)

    ctx = jnp.concatenate(ctx_parts, axis=-1)                        # (S, D)

    # ---- single full-width output projection (no (H,S,D) intermediate) ----
    attn_out = jnp.dot(ctx.astype(bf16), wo[...],
                       preferred_element_type=f32) + bo[...]         # (S, D)

    # dropout is identity at inference; residual connection (f32)
    out = attn_out + x

    # ---- PositionwiseFeedForward: LN -> W1 -> ReLU -> W2 -> residual ----
    on = _layer_norm(out, ln2_g[...], ln2_b[...])
    inter = jnp.maximum(
        jnp.dot(on.astype(bf16), w1[...],
                preferred_element_type=f32) + b1[...], 0.0)
    ff = jnp.dot(inter.astype(bf16), w2[...],
                 preferred_element_type=f32) + b2[...]

    out_ref[0] = (ff + out).astype(out_ref.dtype)


# ------------------------------- wrapper -------------------------------------

def stransformer_encoder_layer(x, mask, params, heads):
    """x: (B, S, D) f32.
    mask: (B, Qm, S) int, nonzero == masked key; Qm is 1 for the usual OpenNMT
    key-padding mask (broadcast over queries) or S for a full attention mask.
    """
    B, S, D = x.shape
    dh = D // heads
    d_ff = params["w1"].shape[1]
    Qm = mask.shape[1]

    bf16, f32 = jnp.bfloat16, jnp.float32

    # Fold the 1/sqrt(dh) scale into the Q weight/bias, fuse Q/K/V into a
    # single (D, 3D) bf16 weight (one lane-dense matmul inside the kernel).
    scale = jnp.float32(1.0 / math.sqrt(dh))
    w_qkv = jnp.concatenate(
        [params["wq"] * scale, params["wk"], params["wv"]], axis=1).astype(bf16)
    b_qkv = jnp.concatenate(
        [params["bq"] * scale, params["bk"], params["bv"]], axis=1).astype(f32)

    # Mask as an additive f32 bias (0 / -1e18): one VPU add inside the kernel
    # instead of compare+select over every score element.
    mask_bias = jnp.where(mask != 0, jnp.float32(-1e18), jnp.float32(0.0))

    prepped = [
        params["ln1_g"].astype(f32), params["ln1_b"].astype(f32),
        w_qkv, b_qkv,
        params["wo"].astype(bf16), params["bo"].astype(f32),
        params["ln2_g"].astype(f32), params["ln2_b"].astype(f32),
        params["w1"].astype(bf16), params["b1"].astype(f32),
        params["w2"].astype(bf16), params["b2"].astype(f32),
    ]

    def const_spec(p):
        nd = p.ndim
        return pl.BlockSpec(p.shape, lambda b, _nd=nd: (0,) * _nd)

    in_specs = ([pl.BlockSpec((1, S, D), lambda b: (b, 0, 0)),
                 pl.BlockSpec((1, Qm, S), lambda b: (b, 0, 0))]
                + [const_spec(p) for p in prepped])
    out_specs = pl.BlockSpec((1, S, D), lambda b: (b, 0, 0))

    # Advisory cost estimate for the XLA scheduler.
    flops = 2 * B * S * (4 * D * D + 2 * S * D + 2 * D * d_ff)
    bytes_accessed = (2 * B * S * D * 4                      # x in + out (f32)
                      + B * Qm * S * 4                        # mask bias
                      + (4 * D * D + 2 * D * d_ff) * 2)       # bf16 weights
    cost = pl.CostEstimate(flops=flops,
                           transcendentals=B * heads * S * S,
                           bytes_accessed=bytes_accessed)

    kernel = functools.partial(_encoder_layer_kernel, heads)

    return pl.pallas_call(
        kernel,
        out_shape=jax.ShapeDtypeStruct((B, S, D), x.dtype),
        grid=(B,),
        in_specs=in_specs,
        out_specs=out_specs,
        compiler_params=pltpu.CompilerParams(
            dimension_semantics=("parallel",),     # batch across TCs (v7x)
            # 32 MiB is plenty here and safe on every generation; raise on
            # v6e (128 MiB physical) / keep <= ~48 MiB on v7x when tiling up.
            vmem_limit_bytes=32 * 1024 * 1024),
        cost_estimate=cost,
    )(x, mask_bias, *prepped)


# --------------------------- pure-JAX reference ------------------------------

def _reference(x, mask, params, heads):
    B, S, D = x.shape
    dh = D // heads

    def ln(y, g, b):
        mu = jnp.mean(y, -1, keepdims=True)
        var = jnp.mean((y - mu) ** 2, -1, keepdims=True)
        return (y - mu) / jnp.sqrt(var + 1e-6) * g + b

    xn = ln(x, params["ln1_g"][0], params["ln1_b"][0])
    q = xn @ params["wq"] + params["bq"][0]
    k = xn @ params["wk"] + params["bk"][0]
    v = xn @ params["wv"] + params["bv"][0]

    def split(t):  # (B,S,D) -> (B,H,S,dh)
        return t.reshape(B, S, heads, dh).transpose(0, 2, 1, 3)

    qh, kh, vh = split(q) / jnp.sqrt(jnp.float32(dh)), split(k), split(v)
    scores = jnp.einsum("bhqd,bhkd->bhqk", qh, kh)
    scores = jnp.where((mask != 0)[:, None], -1e18, scores)   # (B,1,Qm,S) bcast
    attn = jax.nn.softmax(scores, axis=-1)
    ctx = jnp.einsum("bhqk,bhkd->bhqd", attn, vh)
    ctx = ctx.transpose(0, 2, 1, 3).reshape(B, S, D)
    out = ctx @ params["wo"] + params["bo"][0] + x

    on = ln(out, params["ln2_g"][0], params["ln2_b"][0])
    inter = jax.nn.relu(on @ params["w1"] + params["b1"][0])
    return inter @ params["w2"] + params["b2"][0] + out


# ---------------------------------- main --------------------------------------

if __name__ == "__main__":
    # Small, but lane-dense: D and d_ff are multiples of 128 (review item).
    B, S, D, H, D_FF = 2, 16, 128, 4, 256

    key = jax.random.PRNGKey(0)
    keys = jax.random.split(key, 16)

    def w(k, shape, scale=0.05):
        return (scale * jax.random.normal(k, shape)).astype(jnp.float32)

    params = {
        "ln1_g": jnp.ones((1, D), jnp.float32),
        "ln1_b": jnp.zeros((1, D), jnp.float32),
        "wq": w(keys[0], (D, D)), "bq": w(keys[1], (1, D)),
        "wk": w(keys[2], (D, D)), "bk": w(keys[3], (1, D)),
        "wv": w(keys[4], (D, D)), "bv": w(keys[5], (1, D)),
        "wo": w(keys[6], (D, D)), "bo": w(keys[7], (1, D)),
        "ln2_g": jnp.ones((1, D), jnp.float32),
        "ln2_b": jnp.zeros((1, D), jnp.float32),
        "w1": w(keys[8], (D, D_FF)), "b1": w(keys[9], (1, D_FF)),
        "w2": w(keys[10], (D_FF, D)), "b2": w(keys[11], (1, D)),
    }

    x = jax.random.normal(keys[12], (B, S, D), jnp.float32)

    # key-padding mask in the OpenNMT (B, 1, S) form: positions >= length masked
    lengths = jnp.array([S, S - 5], jnp.int32)
    key_idx = jnp.arange(S)[None, None, :]                        # (1,1,S)
    mask = (key_idx >= lengths[:, None, None]).astype(jnp.int32)  # (B,1,S)

    out = stransformer_encoder_layer(x, mask, params, H)
    out = jax.block_until_ready(out)

    ref = _reference(x, mask, params, H)
    assert out.shape == (B, S, D)
    assert bool(jnp.all(jnp.isfinite(out)))
    # bf16 matmul operands (f32 accumulation) + approx reciprocal in softmax
    # => relaxed tolerance vs. the all-f32 reference.
    assert jnp.allclose(out, ref, atol=5e-2, rtol=5e-2)

    print("KERNEL_OK")
</pallas_src>

<mosaic_0001>
module attributes {stable_mosaic.version = 11 : i64} {
  func.func @_encoder_layer_kernel(%arg0: i32, %arg1: memref<1x16x128xf32, #tpu.memory_space<vmem>>, %arg2: memref<1x1x16xf32, #tpu.memory_space<vmem>>, %arg3: memref<1x128xf32, #tpu.memory_space<vmem>>, %arg4: memref<1x128xf32, #tpu.memory_space<vmem>>, %arg5: memref<128x384xbf16, #tpu.memory_space<vmem>>, %arg6: memref<1x384xf32, #tpu.memory_space<vmem>>, %arg7: memref<128x128xbf16, #tpu.memory_space<vmem>>, %arg8: memref<1x128xf32, #tpu.memory_space<vmem>>, %arg9: memref<1x128xf32, #tpu.memory_space<vmem>>, %arg10: memref<1x128xf32, #tpu.memory_space<vmem>>, %arg11: memref<128x256xbf16, #tpu.memory_space<vmem>>, %arg12: memref<1x256xf32, #tpu.memory_space<vmem>>, %arg13: memref<256x128xbf16, #tpu.memory_space<vmem>>, %arg14: memref<1x128xf32, #tpu.memory_space<vmem>>, %arg15: memref<1x16x128xf32, #tpu.memory_space<vmem>>) attributes {dimension_semantics = [#tpu.dimension_semantics<parallel>], iteration_bounds = array<i64: 2>, scalar_prefetch = 0 : i64, scratch_operands = 0 : i64, tpu.core_type = #tpu.core_type<tc>, window_params = [{transform_indices = @transform_0, window_bounds = array<i64: 1, 16, 128>}, {transform_indices = @transform_1, window_bounds = array<i64: 1, 1, 16>}, {pipeline_mode = #tpu.pipeline_mode<synchronous>, transform_indices = @transform_2, window_bounds = array<i64: 1, 128>}, {pipeline_mode = #tpu.pipeline_mode<synchronous>, transform_indices = @transform_3, window_bounds = array<i64: 1, 128>}, {pipeline_mode = #tpu.pipeline_mode<synchronous>, transform_indices = @transform_4, window_bounds = array<i64: 128, 384>}, {pipeline_mode = #tpu.pipeline_mode<synchronous>, transform_indices = @transform_5, window_bounds = array<i64: 1, 384>}, {pipeline_mode = #tpu.pipeline_mode<synchronous>, transform_indices = @transform_6, window_bounds = array<i64: 128, 128>}, {pipeline_mode = #tpu.pipeline_mode<synchronous>, transform_indices = @transform_7, window_bounds = array<i64: 1, 128>}, {pipeline_mode = #tpu.pipeline_mode<synchronous>, transform_indices = @transform_8, window_bounds = array<i64: 1, 128>}, {pipeline_mode = #tpu.pipeline_mode<synchronous>, transform_indices = @transform_9, window_bounds = array<i64: 1, 128>}, {pipeline_mode = #tpu.pipeline_mode<synchronous>, transform_indices = @transform_10, window_bounds = array<i64: 128, 256>}, {pipeline_mode = #tpu.pipeline_mode<synchronous>, transform_indices = @transform_11, window_bounds = array<i64: 1, 256>}, {pipeline_mode = #tpu.pipeline_mode<synchronous>, transform_indices = @transform_12, window_bounds = array<i64: 256, 128>}, {pipeline_mode = #tpu.pipeline_mode<synchronous>, transform_indices = @transform_13, window_bounds = array<i64: 1, 128>}, {transform_indices = @transform_14, window_bounds = array<i64: 1, 16, 128>}]} {
    %c0 = arith.constant 0 : index
    %c0_0 = arith.constant 0 : index
    %c0_1 = arith.constant 0 : index
    %0 = vector.load %arg1[%c0, %c0_0, %c0_1] : memref<1x16x128xf32, #tpu.memory_space<vmem>>, vector<1x16x128xf32>
    %1 = vector.shape_cast %0 : vector<1x16x128xf32> to vector<16x128xf32>
    %c0_2 = arith.constant 0 : index
    %c0_3 = arith.constant 0 : index
    %c0_4 = arith.constant 0 : index
    %2 = vector.load %arg2[%c0_2, %c0_3, %c0_4] : memref<1x1x16xf32, #tpu.memory_space<vmem>>, vector<1x1x16xf32>
    %3 = vector.shape_cast %2 : vector<1x1x16xf32> to vector<1x16xf32>
    %c0_5 = arith.constant 0 : index
    %c0_6 = arith.constant 0 : index
    %4 = vector.load %arg3[%c0_5, %c0_6] : memref<1x128xf32, #tpu.memory_space<vmem>>, vector<1x128xf32>
    %c0_7 = arith.constant 0 : index
    %c0_8 = arith.constant 0 : index
    %5 = vector.load %arg4[%c0_7, %c0_8] : memref<1x128xf32, #tpu.memory_space<vmem>>, vector<1x128xf32>
    %cst = arith.constant dense<0.000000e+00> : vector<16xf32>
    %6 = vector.multi_reduction <add>, %1, %cst [1] : vector<16x128xf32> to vector<16xf32>
    %7 = vector.shape_cast %6 : vector<16xf32> to vector<16x1xf32>
    %cst_9 = arith.constant 1.280000e+02 : f32
    %8 = vector.broadcast %cst_9 : f32 to vector<16x1xf32>
    %9 = arith.divf %7, %8 : vector<16x1xf32>
    %10 = vector.broadcast %9 : vector<16x1xf32> to vector<16x128xf32>
    %11 = arith.subf %1, %10 : vector<16x128xf32>
    %12 = arith.mulf %11, %11 : vector<16x128xf32>
    %cst_10 = arith.constant dense<0.000000e+00> : vector<16xf32>
    %13 = vector.multi_reduction <add>, %12, %cst_10 [1] : vector<16x128xf32> to vector<16xf32>
    %14 = vector.shape_cast %13 : vector<16xf32> to vector<16x1xf32>
    %cst_11 = arith.constant 1.280000e+02 : f32
    %15 = vector.broadcast %cst_11 : f32 to vector<16x1xf32>
    %16 = arith.divf %14, %15 : vector<16x1xf32>
    %17 = vector.broadcast %9 : vector<16x1xf32> to vector<16x128xf32>
    %18 = arith.subf %1, %17 : vector<16x128xf32>
    %cst_12 = arith.constant 9.99999997E-7 : f32
    %19 = vector.broadcast %cst_12 : f32 to vector<16x1xf32>
    %20 = arith.addf %16, %19 : vector<16x1xf32>
    %21 = math.rsqrt %20 : vector<16x1xf32>
    %22 = vector.broadcast %21 : vector<16x1xf32> to vector<16x128xf32>
    %23 = arith.mulf %18, %22 : vector<16x128xf32>
    %24 = vector.broadcast %4 : vector<1x128xf32> to vector<16x128xf32>
    %25 = arith.mulf %23, %24 : vector<16x128xf32>
    %26 = vector.broadcast %5 : vector<1x128xf32> to vector<16x128xf32>
    %27 = arith.addf %25, %26 : vector<16x128xf32>
    %28 = arith.truncf %27 : vector<16x128xf32> to vector<16x128xbf16>
    %c0_13 = arith.constant 0 : index
    %c0_14 = arith.constant 0 : index
    %29 = vector.load %arg5[%c0_13, %c0_14] : memref<128x384xbf16, #tpu.memory_space<vmem>>, vector<128x384xbf16>
    %cst_15 = arith.constant dense<0.000000e+00> : vector<16x384xf32>
    %30 = tpu.matmul %28, %29, %cst_15 {dimension_numbers = #tpu.dot_dimension_numbers<[1], [0], [0], [1], [0, 0, 1, 1], [], []>} : vector<16x128xbf16>, vector<128x384xbf16>, vector<16x384xf32> -> vector<16x384xf32>
    %c0_16 = arith.constant 0 : index
    %c0_17 = arith.constant 0 : index
    %31 = vector.load %arg6[%c0_16, %c0_17] : memref<1x384xf32, #tpu.memory_space<vmem>>, vector<1x384xf32>
    %32 = vector.broadcast %31 : vector<1x384xf32> to vector<16x384xf32>
    %33 = arith.addf %30, %32 : vector<16x384xf32>
    %34 = vector.extract_strided_slice %33 {offsets = [0, 0], sizes = [16, 32], strides = [1, 1]} : vector<16x384xf32> to vector<16x32xf32>
    %35 = arith.truncf %34 : vector<16x32xf32> to vector<16x32xbf16>
    %36 = vector.extract_strided_slice %33 {offsets = [0, 128], sizes = [16, 32], strides = [1, 1]} : vector<16x384xf32> to vector<16x32xf32>
    %37 = arith.truncf %36 : vector<16x32xf32> to vector<16x32xbf16>
    %38 = vector.extract_strided_slice %33 {offsets = [0, 256], sizes = [16, 32], strides = [1, 1]} : vector<16x384xf32> to vector<16x32xf32>
    %39 = arith.truncf %38 : vector<16x32xf32> to vector<16x32xbf16>
    "tpu.trace_start"() <{level = 10 : i32, message = "qd,kd->qk"}> : () -> ()
    %cst_18 = arith.constant dense<0.000000e+00> : vector<16x16xf32>
    %40 = tpu.matmul %35, %37, %cst_18 {dimension_numbers = #tpu.dot_dimension_numbers<[1], [1], [0], [0], [0, 0, 1, 0], [], []>} : vector<16x32xbf16>, vector<16x32xbf16>, vector<16x16xf32> -> vector<16x16xf32>
    "tpu.trace_stop"() : () -> ()
    %41 = vector.broadcast %3 : vector<1x16xf32> to vector<16x16xf32>
    %42 = arith.addf %40, %41 : vector<16x16xf32>
    %cst_19 = arith.constant dense<0xFF800000> : vector<16xf32>
    %43 = vector.multi_reduction <maximumf>, %42, %cst_19 [1] : vector<16x16xf32> to vector<16xf32>
    %44 = vector.shape_cast %43 : vector<16xf32> to vector<16x1xf32>
    %45 = vector.broadcast %44 : vector<16x1xf32> to vector<16x16xf32>
    %46 = arith.subf %42, %45 : vector<16x16xf32>
    %47 = math.exp %46 : vector<16x16xf32>
    %cst_20 = arith.constant dense<0.000000e+00> : vector<16xf32>
    %48 = vector.multi_reduction <add>, %47, %cst_20 [1] : vector<16x16xf32> to vector<16xf32>
    %49 = vector.shape_cast %48 : vector<16xf32> to vector<16x1xf32>
    %50 = tpu.reciprocal %49 {approx = true} : vector<16x1xf32> -> vector<16x1xf32>
    %51 = vector.broadcast %50 : vector<16x1xf32> to vector<16x16xf32>
    %52 = arith.mulf %47, %51 : vector<16x16xf32>
    %53 = arith.truncf %52 : vector<16x16xf32> to vector<16x16xbf16>
    %cst_21 = arith.constant dense<0.000000e+00> : vector<16x32xf32>
    %54 = tpu.matmul %53, %39, %cst_21 {dimension_numbers = #tpu.dot_dimension_numbers<[1], [0], [0], [1], [0, 0, 1, 1], [], []>} : vector<16x16xbf16>, vector<16x32xbf16>, vector<16x32xf32> -> vector<16x32xf32>
    %55 = vector.extract_strided_slice %33 {offsets = [0, 32], sizes = [16, 32], strides = [1, 1]} : vector<16x384xf32> to vector<16x32xf32>
    %56 = arith.truncf %55 : vector<16x32xf32> to vector<16x32xbf16>
    %57 = vector.extract_strided_slice %33 {offsets = [0, 160], sizes = [16, 32], strides = [1, 1]} : vector<16x384xf32> to vector<16x32xf32>
    %58 = arith.truncf %57 : vector<16x32xf32> to vector<16x32xbf16>
    %59 = vector.extract_strided_slice %33 {offsets = [0, 288], sizes = [16, 32], strides = [1, 1]} : vector<16x384xf32> to vector<16x32xf32>
    %60 = arith.truncf %59 : vector<16x32xf32> to vector<16x32xbf16>
    "tpu.trace_start"() <{level = 10 : i32, message = "qd,kd->qk"}> : () -> ()
    %cst_22 = arith.constant dense<0.000000e+00> : vector<16x16xf32>
    %61 = tpu.matmul %56, %58, %cst_22 {dimension_numbers = #tpu.dot_dimension_numbers<[1], [1], [0], [0], [0, 0, 1, 0], [], []>} : vector<16x32xbf16>, vector<16x32xbf16>, vector<16x16xf32> -> vector<16x16xf32>
    "tpu.trace_stop"() : () -> ()
    %62 = vector.broadcast %3 : vector<1x16xf32> to vector<16x16xf32>
    %63 = arith.addf %61, %62 : vector<16x16xf32>
    %cst_23 = arith.constant dense<0xFF800000> : vector<16xf32>
    %64 = vector.multi_reduction <maximumf>, %63, %cst_23 [1] : vector<16x16xf32> to vector<16xf32>
    %65 = vector.shape_cast %64 : vector<16xf32> to vector<16x1xf32>
    %66 = vector.broadcast %65 : vector<16x1xf32> to vector<16x16xf32>
    %67 = arith.subf %63, %66 : vector<16x16xf32>
    %68 = math.exp %67 : vector<16x16xf32>
    %cst_24 = arith.constant dense<0.000000e+00> : vector<16xf32>
    %69 = vector.multi_reduction <add>, %68, %cst_24 [1] : vector<16x16xf32> to vector<16xf32>
    %70 = vector.shape_cast %69 : vector<16xf32> to vector<16x1xf32>
    %71 = tpu.reciprocal %70 {approx = true} : vector<16x1xf32> -> vector<16x1xf32>
    %72 = vector.broadcast %71 : vector<16x1xf32> to vector<16x16xf32>
    %73 = arith.mulf %68, %72 : vector<16x16xf32>
    %74 = arith.truncf %73 : vector<16x16xf32> to vector<16x16xbf16>
    %cst_25 = arith.constant dense<0.000000e+00> : vector<16x32xf32>
    %75 = tpu.matmul %74, %60, %cst_25 {dimension_numbers = #tpu.dot_dimension_numbers<[1], [0], [0], [1], [0, 0, 1, 1], [], []>} : vector<16x16xbf16>, vector<16x32xbf16>, vector<16x32xf32> -> vector<16x32xf32>
    %76 = vector.extract_strided_slice %33 {offsets = [0, 64], sizes = [16, 32], strides = [1, 1]} : vector<16x384xf32> to vector<16x32xf32>
    %77 = arith.truncf %76 : vector<16x32xf32> to vector<16x32xbf16>
    %78 = vector.extract_strided_slice %33 {offsets = [0, 192], sizes = [16, 32], strides = [1, 1]} : vector<16x384xf32> to vector<16x32xf32>
    %79 = arith.truncf %78 : vector<16x32xf32> to vector<16x32xbf16>
    %80 = vector.extract_strided_slice %33 {offsets = [0, 320], sizes = [16, 32], strides = [1, 1]} : vector<16x384xf32> to vector<16x32xf32>
    %81 = arith.truncf %80 : vector<16x32xf32> to vector<16x32xbf16>
    "tpu.trace_start"() <{level = 10 : i32, message = "qd,kd->qk"}> : () -> ()
    %cst_26 = arith.constant dense<0.000000e+00> : vector<16x16xf32>
    %82 = tpu.matmul %77, %79, %cst_26 {dimension_numbers = #tpu.dot_dimension_numbers<[1], [1], [0], [0], [0, 0, 1, 0], [], []>} : vector<16x32xbf16>, vector<16x32xbf16>, vector<16x16xf32> -> vector<16x16xf32>
    "tpu.trace_stop"() : () -> ()
    %83 = vector.broadcast %3 : vector<1x16xf32> to vector<16x16xf32>
    %84 = arith.addf %82, %83 : vector<16x16xf32>
    %cst_27 = arith.constant dense<0xFF800000> : vector<16xf32>
    %85 = vector.multi_reduction <maximumf>, %84, %cst_27 [1] : vector<16x16xf32> to vector<16xf32>
    %86 = vector.shape_cast %85 : vector<16xf32> to vector<16x1xf32>
    %87 = vector.broadcast %86 : vector<16x1xf32> to vector<16x16xf32>
    %88 = arith.subf %84, %87 : vector<16x16xf32>
    %89 = math.exp %88 : vector<16x16xf32>
    %cst_28 = arith.constant dense<0.000000e+00> : vector<16xf32>
    %90 = vector.multi_reduction <add>, %89, %cst_28 [1] : vector<16x16xf32> to vector<16xf32>
    %91 = vector.shape_cast %90 : vector<16xf32> to vector<16x1xf32>
    %92 = tpu.reciprocal %91 {approx = true} : vector<16x1xf32> -> vector<16x1xf32>
    %93 = vector.broadcast %92 : vector<16x1xf32> to vector<16x16xf32>
    %94 = arith.mulf %89, %93 : vector<16x16xf32>
    %95 = arith.truncf %94 : vector<16x16xf32> to vector<16x16xbf16>
    %cst_29 = arith.constant dense<0.000000e+00> : vector<16x32xf32>
    %96 = tpu.matmul %95, %81, %cst_29 {dimension_numbers = #tpu.dot_dimension_numbers<[1], [0], [0], [1], [0, 0, 1, 1], [], []>} : vector<16x16xbf16>, vector<16x32xbf16>, vector<16x32xf32> -> vector<16x32xf32>
    %97 = vector.extract_strided_slice %33 {offsets = [0, 96], sizes = [16, 32], strides = [1, 1]} : vector<16x384xf32> to vector<16x32xf32>
    %98 = arith.truncf %97 : vector<16x32xf32> to vector<16x32xbf16>
    %99 = vector.extract_strided_slice %33 {offsets = [0, 224], sizes = [16, 32], strides = [1, 1]} : vector<16x384xf32> to vector<16x32xf32>
    %100 = arith.truncf %99 : vector<16x32xf32> to vector<16x32xbf16>
    %101 = vector.extract_strided_slice %33 {offsets = [0, 352], sizes = [16, 32], strides = [1, 1]} : vector<16x384xf32> to vector<16x32xf32>
    %102 = arith.truncf %101 : vector<16x32xf32> to vector<16x32xbf16>
    "tpu.trace_start"() <{level = 10 : i32, message = "qd,kd->qk"}> : () -> ()
    %cst_30 = arith.constant dense<0.000000e+00> : vector<16x16xf32>
    %103 = tpu.matmul %98, %100, %cst_30 {dimension_numbers = #tpu.dot_dimension_numbers<[1], [1], [0], [0], [0, 0, 1, 0], [], []>} : vector<16x32xbf16>, vector<16x32xbf16>, vector<16x16xf32> -> vector<16x16xf32>
    "tpu.trace_stop"() : () -> ()
    %104 = vector.broadcast %3 : vector<1x16xf32> to vector<16x16xf32>
    %105 = arith.addf %103, %104 : vector<16x16xf32>
    %cst_31 = arith.constant dense<0xFF800000> : vector<16xf32>
    %106 = vector.multi_reduction <maximumf>, %105, %cst_31 [1] : vector<16x16xf32> to vector<16xf32>
    %107 = vector.shape_cast %106 : vector<16xf32> to vector<16x1xf32>
    %108 = vector.broadcast %107 : vector<16x1xf32> to vector<16x16xf32>
    %109 = arith.subf %105, %108 : vector<16x16xf32>
    %110 = math.exp %109 : vector<16x16xf32>
    %cst_32 = arith.constant dense<0.000000e+00> : vector<16xf32>
    %111 = vector.multi_reduction <add>, %110, %cst_32 [1] : vector<16x16xf32> to vector<16xf32>
    %112 = vector.shape_cast %111 : vector<16xf32> to vector<16x1xf32>
    %113 = tpu.reciprocal %112 {approx = true} : vector<16x1xf32> -> vector<16x1xf32>
    %114 = vector.broadcast %113 : vector<16x1xf32> to vector<16x16xf32>
    %115 = arith.mulf %110, %114 : vector<16x16xf32>
    %116 = arith.truncf %115 : vector<16x16xf32> to vector<16x16xbf16>
    %cst_33 = arith.constant dense<0.000000e+00> : vector<16x32xf32>
    %117 = tpu.matmul %116, %102, %cst_33 {dimension_numbers = #tpu.dot_dimension_numbers<[1], [0], [0], [1], [0, 0, 1, 1], [], []>} : vector<16x16xbf16>, vector<16x32xbf16>, vector<16x32xf32> -> vector<16x32xf32>
    %118 = tpu.concatenate %54, %75, %96, %117 in 1 : vector<16x32xf32>, vector<16x32xf32>, vector<16x32xf32>, vector<16x32xf32> -> vector<16x128xf32>
    %119 = arith.truncf %118 : vector<16x128xf32> to vector<16x128xbf16>
    %c0_34 = arith.constant 0 : index
    %c0_35 = arith.constant 0 : index
    %120 = vector.load %arg7[%c0_34, %c0_35] : memref<128x128xbf16, #tpu.memory_space<vmem>>, vector<128x128xbf16>
    %cst_36 = arith.constant dense<0.000000e+00> : vector<16x128xf32>
    %121 = tpu.matmul %119, %120, %cst_36 {dimension_numbers = #tpu.dot_dimension_numbers<[1], [0], [0], [1], [0, 0, 1, 1], [], []>} : vector<16x128xbf16>, vector<128x128xbf16>, vector<16x128xf32> -> vector<16x128xf32>
    %c0_37 = arith.constant 0 : index
    %c0_38 = arith.constant 0 : index
    %122 = vector.load %arg8[%c0_37, %c0_38] : memref<1x128xf32, #tpu.memory_space<vmem>>, vector<1x128xf32>
    %123 = vector.broadcast %122 : vector<1x128xf32> to vector<16x128xf32>
    %124 = arith.addf %121, %123 : vector<16x128xf32>
    %125 = arith.addf %124, %1 : vector<16x128xf32>
    %c0_39 = arith.constant 0 : index
    %c0_40 = arith.constant 0 : index
    %126 = vector.load %arg9[%c0_39, %c0_40] : memref<1x128xf32, #tpu.memory_space<vmem>>, vector<1x128xf32>
    %c0_41 = arith.constant 0 : index
    %c0_42 = arith.constant 0 : index
    %127 = vector.load %arg10[%c0_41, %c0_42] : memref<1x128xf32, #tpu.memory_space<vmem>>, vector<1x128xf32>
    %cst_43 = arith.constant dense<0.000000e+00> : vector<16xf32>
    %128 = vector.multi_reduction <add>, %125, %cst_43 [1] : vector<16x128xf32> to vector<16xf32>
    %129 = vector.shape_cast %128 : vector<16xf32> to vector<16x1xf32>
    %cst_44 = arith.constant 1.280000e+02 : f32
    %130 = vector.broadcast %cst_44 : f32 to vector<16x1xf32>
    %131 = arith.divf %129, %130 : vector<16x1xf32>
    %132 = vector.broadcast %131 : vector<16x1xf32> to vector<16x128xf32>
    %133 = arith.subf %125, %132 : vector<16x128xf32>
    %134 = arith.mulf %133, %133 : vector<16x128xf32>
    %cst_45 = arith.constant dense<0.000000e+00> : vector<16xf32>
    %135 = vector.multi_reduction <add>, %134, %cst_45 [1] : vector<16x128xf32> to vector<16xf32>
    %136 = vector.shape_cast %135 : vector<16xf32> to vector<16x1xf32>
    %cst_46 = arith.constant 1.280000e+02 : f32
    %137 = vector.broadcast %cst_46 : f32 to vector<16x1xf32>
    %138 = arith.divf %136, %137 : vector<16x1xf32>
    %139 = vector.broadcast %131 : vector<16x1xf32> to vector<16x128xf32>
    %140 = arith.subf %125, %139 : vector<16x128xf32>
    %cst_47 = arith.constant 9.99999997E-7 : f32
    %141 = vector.broadcast %cst_47 : f32 to vector<16x1xf32>
    %142 = arith.addf %138, %141 : vector<16x1xf32>
    %143 = math.rsqrt %142 : vector<16x1xf32>
    %144 = vector.broadcast %143 : vector<16x1xf32> to vector<16x128xf32>
    %145 = arith.mulf %140, %144 : vector<16x128xf32>
    %146 = vector.broadcast %126 : vector<1x128xf32> to vector<16x128xf32>
    %147 = arith.mulf %145, %146 : vector<16x128xf32>
    %148 = vector.broadcast %127 : vector<1x128xf32> to vector<16x128xf32>
    %149 = arith.addf %147, %148 : vector<16x128xf32>
    %150 = arith.truncf %149 : vector<16x128xf32> to vector<16x128xbf16>
    %c0_48 = arith.constant 0 : index
    %c0_49 = arith.constant 0 : index
    %151 = vector.load %arg11[%c0_48, %c0_49] : memref<128x256xbf16, #tpu.memory_space<vmem>>, vector<128x256xbf16>
    %cst_50 = arith.constant dense<0.000000e+00> : vector<16x256xf32>
    %152 = tpu.matmul %150, %151, %cst_50 {dimension_numbers = #tpu.dot_dimension_numbers<[1], [0], [0], [1], [0, 0, 1, 1], [], []>} : vector<16x128xbf16>, vector<128x256xbf16>, vector<16x256xf32> -> vector<16x256xf32>
    %c0_51 = arith.constant 0 : index
    %c0_52 = arith.constant 0 : index
    %153 = vector.load %arg12[%c0_51, %c0_52] : memref<1x256xf32, #tpu.memory_space<vmem>>, vector<1x256xf32>
    %154 = vector.broadcast %153 : vector<1x256xf32> to vector<16x256xf32>
    %155 = arith.addf %152, %154 : vector<16x256xf32>
    %cst_53 = arith.constant 0.000000e+00 : f32
    %156 = vector.broadcast %cst_53 : f32 to vector<16x256xf32>
    %157 = arith.maximumf %155, %156 : vector<16x256xf32>
    %158 = arith.truncf %157 : vector<16x256xf32> to vector<16x256xbf16>
    %c0_54 = arith.constant 0 : index
    %c0_55 = arith.constant 0 : index
    %159 = vector.load %arg13[%c0_54, %c0_55] : memref<256x128xbf16, #tpu.memory_space<vmem>>, vector<256x128xbf16>
    %cst_56 = arith.constant dense<0.000000e+00> : vector<16x128xf32>
    %160 = tpu.matmul %158, %159, %cst_56 {dimension_numbers = #tpu.dot_dimension_numbers<[1], [0], [0], [1], [0, 0, 1, 1], [], []>} : vector<16x256xbf16>, vector<256x128xbf16>, vector<16x128xf32> -> vector<16x128xf32>
    %c0_57 = arith.constant 0 : index
    %c0_58 = arith.constant 0 : index
    %161 = vector.load %arg14[%c0_57, %c0_58] : memref<1x128xf32, #tpu.memory_space<vmem>>, vector<1x128xf32>
    %162 = vector.broadcast %161 : vector<1x128xf32> to vector<16x128xf32>
    %163 = arith.addf %160, %162 : vector<16x128xf32>
    %164 = arith.addf %163, %125 : vector<16x128xf32>
    %c0_59 = arith.constant 0 : index
    %c0_60 = arith.constant 0 : index
    %c0_61 = arith.constant 0 : index
    %165 = vector.load %arg15[%c0_59, %c0_60, %c0_61] : memref<1x16x128xf32, #tpu.memory_space<vmem>>, vector<1x16x128xf32>
    %166 = vector.shape_cast %165 : vector<1x16x128xf32> to vector<16x128xf32>
    %167 = vector.shape_cast %164 : vector<16x128xf32> to vector<1x16x128xf32>
    tpu.vector_store %arg15[%c0_59, %c0_60, %c0_61], %167 {strides = array<i32>} : memref<1x16x128xf32, #tpu.memory_space<vmem>>, vector<1x16x128xf32>,
    return
  }
  func.func @transform_0(%arg0: i32) -> (i32, i32, i32) {
    %c0_i32 = arith.constant 0 : i32
    %c0_i32_0 = arith.constant 0 : i32
    %c0_i32_1 = arith.constant 0 : i32
    return %arg0, %c0_i32, %c0_i32_0 : i32, i32, i32
  }
  func.func @transform_1(%arg0: i32) -> (i32, i32, i32) {
    %c0_i32 = arith.constant 0 : i32
    %c0_i32_0 = arith.constant 0 : i32
    %c0_i32_1 = arith.constant 0 : i32
    return %arg0, %c0_i32, %c0_i32_0 : i32, i32, i32
  }
  func.func @transform_2(%arg0: i32) -> (i32, i32) {
    %c0_i32 = arith.constant 0 : i32
    %c0_i32_0 = arith.constant 0 : i32
    %c0_i32_1 = arith.constant 0 : i32
    return %c0_i32, %c0_i32_0 : i32, i32
  }
  func.func @transform_3(%arg0: i32) -> (i32, i32) {
    %c0_i32 = arith.constant 0 : i32
    %c0_i32_0 = arith.constant 0 : i32
    %c0_i32_1 = arith.constant 0 : i32
    return %c0_i32, %c0_i32_0 : i32, i32
  }
  func.func @transform_4(%arg0: i32) -> (i32, i32) {
    %c0_i32 = arith.constant 0 : i32
    %c0_i32_0 = arith.constant 0 : i32
    %c0_i32_1 = arith.constant 0 : i32
    return %c0_i32, %c0_i32_0 : i32, i32
  }
  func.func @transform_5(%arg0: i32) -> (i32, i32) {
    %c0_i32 = arith.constant 0 : i32
    %c0_i32_0 = arith.constant 0 : i32
    %c0_i32_1 = arith.constant 0 : i32
    return %c0_i32, %c0_i32_0 : i32, i32
  }
  func.func @transform_6(%arg0: i32) -> (i32, i32) {
    %c0_i32 = arith.constant 0 : i32
    %c0_i32_0 = arith.constant 0 : i32
    %c0_i32_1 = arith.constant 0 : i32
    return %c0_i32, %c0_i32_0 : i32, i32
  }
  func.func @transform_7(%arg0: i32) -> (i32, i32) {
    %c0_i32 = arith.constant 0 : i32
    %c0_i32_0 = arith.constant 0 : i32
    %c0_i32_1 = arith.constant 0 : i32
    return %c0_i32, %c0_i32_0 : i32, i32
  }
  func.func @transform_8(%arg0: i32) -> (i32, i32) {
    %c0_i32 = arith.constant 0 : i32
    %c0_i32_0 = arith.constant 0 : i32
    %c0_i32_1 = arith.constant 0 : i32
    return %c0_i32, %c0_i32_0 : i32, i32
  }
  func.func @transform_9(%arg0: i32) -> (i32, i32) {
    %c0_i32 = arith.constant 0 : i32
    %c0_i32_0 = arith.constant 0 : i32
    %c0_i32_1 = arith.constant 0 : i32
    return %c0_i32, %c0_i32_0 : i32, i32
  }
  func.func @transform_10(%arg0: i32) -> (i32, i32) {
    %c0_i32 = arith.constant 0 : i32
    %c0_i32_0 = arith.constant 0 : i32
    %c0_i32_1 = arith.constant 0 : i32
    return %c0_i32, %c0_i32_0 : i32, i32
  }
  func.func @transform_11(%arg0: i32) -> (i32, i32) {
    %c0_i32 = arith.constant 0 : i32
    %c0_i32_0 = arith.constant 0 : i32
    %c0_i32_1 = arith.constant 0 : i32
    return %c0_i32, %c0_i32_0 : i32, i32
  }
  func.func @transform_12(%arg0: i32) -> (i32, i32) {
    %c0_i32 = arith.constant 0 : i32
    %c0_i32_0 = arith.constant 0 : i32
    %c0_i32_1 = arith.constant 0 : i32
    return %c0_i32, %c0_i32_0 : i32, i32
  }
  func.func @transform_13(%arg0: i32) -> (i32, i32) {
    %c0_i32 = arith.constant 0 : i32
    %c0_i32_0 = arith.constant 0 : i32
    %c0_i32_1 = arith.constant 0 : i32
    return %c0_i32, %c0_i32_0 : i32, i32
  }
  func.func @transform_14(%arg0: i32) -> (i32, i32, i32) {
    %c0_i32 = arith.constant 0 : i32
    %c0_i32_0 = arith.constant 0 : i32
    %c0_i32_1 = arith.constant 0 : i32
    return %arg0, %c0_i32, %c0_i32_0 : i32, i32, i32
  }
}

</mosaic_0001>

<llo_original>
// kernel: tpu_custom_call.1
$region0: #{tpu_custom_call.1}
  #allocation0 [shape = 'u32[]', space=smem, size = 0x4, offset = 0x4, fixed_abs, tag = 'smem constant byte address 0x4 - core index']
  #allocation1 [shape = 'u32[144,128]{1,0:T(1,128)}', space=vmem, size = 0x12000, scoped, tag = 'internal scratch']
  %s0 = inlined_call_operand.hbm [shape: f32[2,16,128], index: 0, kind: input, shape index: {}]
  %s1 = inlined_call_operand.hbm [shape: f32[2,1,16], index: 1, kind: input, shape index: {}]
  %s2 = inlined_call_operand.hbm [shape: f32[1,128], index: 2, kind: input, shape index: {}]
  %s3 = inlined_call_operand.hbm [shape: f32[1,128], index: 3, kind: input, shape index: {}]
  %s4 = inlined_call_operand.hbm [shape: bf16[128,384], index: 4, kind: input, shape index: {}]
  %s5 = inlined_call_operand.vmem [shape: f32[1,384], index: 5, kind: input, shape index: {}]
  %s6 = inlined_call_operand.hbm [shape: bf16[128,128], index: 6, kind: input, shape index: {}]
  %s7 = inlined_call_operand.vmem [shape: f32[1,128], index: 7, kind: input, shape index: {}]
  %s8 = inlined_call_operand.vmem [shape: f32[1,128], index: 8, kind: input, shape index: {}]
  %s9 = inlined_call_operand.vmem [shape: f32[1,128], index: 9, kind: input, shape index: {}]
  %s10 = inlined_call_operand.hbm [shape: bf16[128,256], index: 10, kind: input, shape index: {}]
  %s11 = inlined_call_operand.vmem [shape: f32[1,256], index: 11, kind: input, shape index: {}]
  %s12 = inlined_call_operand.hbm [shape: bf16[256,128], index: 12, kind: input, shape index: {}]
  %s13 = inlined_call_operand.vmem [shape: f32[1,128], index: 13, kind: input, shape index: {}]
  %s14 = inlined_call_operand.hbm [shape: f32[2,16,128], index: 14, kind: output, shape index: {}]
  %s15 = sld [smem:[#allocation0]]
  $region121: #{tpu_custom_call.1} parent=0
    _
  %s17 = ssub.s32 1, %s15
  %s18 = scalar_select 0, %s17, %s15
  $region1: #{tpu_custom_call.1} parent=0
    #allocation2 [shape = 'u8[16384]{0}', space=vmem, size = 0x4000, scoped, tag = 'input window, operand 0']
    #allocation3 [shape = 's32[2]{0}', space=sflag, size = 0x8, scoped, tag = 'scoped memory for tpu_custom_call.1']
    #allocation4 [shape = 's32[2]{0}', space=sflag, size = 0x8, scoped, tag = 'scoped memory for tpu_custom_call.1']
    #allocation5 [shape = 'u8[1024]{0}', space=vmem, size = 0x400, scoped, tag = 'input window, operand 1']
    #allocation6 [shape = 's32[2]{0}', space=sflag, size = 0x8, scoped, tag = 'scoped memory for tpu_custom_call.1']
    #allocation7 [shape = 'u8[512]{0}', space=vmem, size = 0x400, scoped, tag = 'input window, operand 2, single buffered']
    #allocation8 [shape = 'u8[512]{0}', space=vmem, size = 0x400, scoped, tag = 'input window, operand 3, single buffered']
    #allocation9 [shape = 's32[1]{0}', space=sflag, size = 0x4, scoped, tag = 'scoped memory for tpu_custom_call.1']
    #allocation10 [shape = 'u8[98304]{0}', space=vmem, size = 0x18000, scoped, tag = 'input window, operand 4, single buffered']
    #allocation11 [shape = 'u8[32768]{0}', space=vmem, size = 0x8000, scoped, tag = 'input window, operand 6, single buffered']
    #allocation12 [shape = 's32[1]{0}', space=sflag, size = 0x4, scoped, tag = 'scoped memory for tpu_custom_call.1']
    #allocation13 [shape = 'u8[65536]{0}', space=vmem, size = 0x10000, scoped, tag = 'input window, operand 10, single buffered']
    #allocation14 [shape = 'u8[65536]{0}', space=vmem, size = 0x10000, scoped, tag = 'input window, operand 12, single buffered']
    #allocation15 [shape = 's32[1]{0}', space=sflag, size = 0x4, scoped, tag = 'scoped memory for tpu_custom_call.1']
    #allocation16 [shape = 'u8[16384]{0}', space=vmem, size = 0x4000, scoped, tag = 'output window, operand 0']
    %19 = vsyncpa [#allocation3], 0
    %s20 = scalar_lea.sflag [#allocation3], 1
    %21 = vsyncpa %s20, 0
    %22 = vsyncpa [#allocation6], 0
    %s23 = scalar_lea.sflag [#allocation6], 1
    %24 = vsyncpa %s23, 0
    %25 = vsyncpa [#allocation9], 0
    %26 = vsyncpa [#allocation12], 0
    %27 = vsyncpa [#allocation15], 0
    %28 = vsyncpa [#allocation4], 0
    %s29 = scalar_lea.sflag [#allocation4], 1
    %30 = vsyncpa %s29, 0
    loop: start=0, step=1, limit=4
    $region2: #{tpu_custom_call.1} parent=1 // loop_pre_header
      _
    $region3: #{tpu_custom_call.1} parent=1 // loop_header
      %s32 = sphi 0, %s36
      %p33 = scmp.ge.s32.totalorder %s32, 4
      %s42 = sphi 0, %s44
      %s45 = sphi 0, %s42
      %s46 = sphi 0, %s45
      %s62 = sphi 0, %s46
      %s68 = sphi 0, %s70
      %s71 = sphi 0, %s68
      %s72 = sphi 0, %s71
      %s88 = sphi 0, %s72
      %s92 = sphi 0, %s92
      %s94 = sphi 0, %s92
      %s95 = sphi 0, %s94
      %s109 = sphi 0, %s95
      %s113 = sphi 0, %s113
      %s115 = sphi 0, %s113
      %s116 = sphi 0, %s115
      %s130 = sphi 0, %s116
      %s134 = sphi 0, %s134
      %s136 = sphi 0, %s134
      %s137 = sphi 0, %s136
      %s151 = sphi 0, %s137
      %s155 = sphi 0, %s155
      %s157 = sphi 0, %s155
      %s158 = sphi 0, %s157
      %s172 = sphi 0, %s158
      %s176 = sphi 0, %s176
      %s178 = sphi 0, %s176
      %s179 = sphi 0, %s178
      %s193 = sphi 0, %s179
      %s197 = sphi 0, %s197
      %s199 = sphi 0, %s197
      %s200 = sphi 0, %s199
      %s214 = sphi 0, %s200
      %s218 = sphi 0, %s218
      %s220 = sphi 0, %s218
      %s221 = sphi 0, %s220
      %s235 = sphi 0, %s221
      %s239 = sphi 0, %s239
      %s241 = sphi 0, %s239
      %s242 = sphi 0, %s241
      %s256 = sphi 0, %s242
      %s260 = sphi 0, %s260
      %s262 = sphi 0, %s260
      %s263 = sphi 0, %s262
      %s277 = sphi 0, %s263
      %s281 = sphi 0, %s281
      %s283 = sphi 0, %s281
      %s284 = sphi 0, %s283
      %s298 = sphi 0, %s284
      %s302 = sphi 0, %s302
      %s304 = sphi 0, %s302
      %s305 = sphi 0, %s304
      %s319 = sphi 0, %s305
      %s323 = sphi 0, %s323
      %s325 = sphi 0, %s323
      %s326 = sphi 0, %s325
      %s340 = sphi 0, %s326
      %s346 = sphi 0, %s348
      %s349 = sphi 0, %s346
      %s350 = sphi 0, %s349
      %s366 = sphi 0, %s350
    $region4: #{tpu_custom_call.1} parent=1 // loop_header_branch
      %35 = sbr.rel (%p33) target = $region8
    $region5: #{tpu_custom_call.1} parent=1 // loop_body
      %s37 = ssub.s32 %s32, 1
      %s38 = ssub.s32 %s32, 2
      %s39 = sadd.s32 %s32, 1
      %s40 = ssub.s32 %s32, %s39
      %p41 = scmp.eq.s32.totalorder %s40, 0
      %s43 = sadd.s32 %s42, 1
      %s44 = scalar_select %p41, %s42, %s43
      %p47 = pneg %p41
      %p48 = scmp.eq.s32.totalorder %s32, 1
      %p49 = por %p47, %p48
      %p50 = scmp.ne.s32.totalorder %s42, %s45
      %p51 = scmp.eq.s32.totalorder %s32, 0
      %p52 = por %p50, %p51
      %p53 = scmp.ne.s32.totalorder %s42, %s45
      %p54 = scmp.eq.s32.totalorder %s37, 1
      %p55 = por %p53, %p54
      %p56 = scmp.ne.s32.totalorder %s45, %s46
      %p57 = scmp.eq.s32.totalorder %s37, 0
      %p58 = por %p56, %p57
      %p59 = scmp.ne.s32.totalorder %s45, %s46
      %p60 = scmp.eq.s32.totalorder %s38, 1
      %p61 = por %p59, %p60
      %p63 = scmp.ne.s32.totalorder %s46, %s62
      %p64 = scmp.eq.s32.totalorder %s38, 0
      %p65 = por %p63, %p64
      %s66 = ssub.s32 %s32, %s39
      %p67 = scmp.eq.s32.totalorder %s66, 0
      %s69 = sadd.s32 %s68, 1
      %s70 = scalar_select %p67, %s68, %s69
      %p73 = pneg %p67
      %p74 = scmp.eq.s32.totalorder %s32, 1
      %p75 = por %p73, %p74
      %p76 = scmp.ne.s32.totalorder %s68, %s71
      %p77 = scmp.eq.s32.totalorder %s32, 0
      %p78 = por %p76, %p77
      %p79 = scmp.ne.s32.totalorder %s68, %s71
      %p80 = scmp.eq.s32.totalorder %s37, 1
      %p81 = por %p79, %p80
      %p82 = scmp.ne.s32.totalorder %s71, %s72
      %p83 = scmp.eq.s32.totalorder %s37, 0
      %p84 = por %p82, %p83
      %p85 = scmp.ne.s32.totalorder %s71, %s72
      %p86 = scmp.eq.s32.totalorder %s38, 1
      %p87 = por %p85, %p86
      %p89 = scmp.ne.s32.totalorder %s72, %s88
      %p90 = scmp.eq.s32.totalorder %s38, 0
      %p91 = por %p89, %p90
      %s93 = sadd.s32 %s92, 1
      %p96 = scmp.eq.s32.totalorder %s32, 1
      %p97 = scmp.ne.s32.totalorder %s92, %s94
      %p98 = scmp.eq.s32.totalorder %s32, 0
      %p99 = por %p97, %p98
      %p100 = scmp.ne.s32.totalorder %s92, %s94
      %p101 = scmp.eq.s32.totalorder %s37, 1
      %p102 = por %p100, %p101
      %p103 = scmp.ne.s32.totalorder %s94, %s95
      %p104 = scmp.eq.s32.totalorder %s37, 0
      %p105 = por %p103, %p104
      %p106 = scmp.ne.s32.totalorder %s94, %s95
      %p107 = scmp.eq.s32.totalorder %s38, 1
      %p108 = por %p106, %p107
      %p110 = scmp.ne.s32.totalorder %s95, %s109
      %p111 = scmp.eq.s32.totalorder %s38, 0
      %p112 = por %p110, %p111
      %s114 = sadd.s32 %s113, 1
      %p117 = scmp.eq.s32.totalorder %s32, 1
      %p118 = scmp.ne.s32.totalorder %s113, %s115
      %p119 = scmp.eq.s32.totalorder %s32, 0
      %p120 = por %p118, %p119
      %p121 = scmp.ne.s32.totalorder %s113, %s115
      %p122 = scmp.eq.s32.totalorder %s37, 1
      %p123 = por %p121, %p122
      %p124 = scmp.ne.s32.totalorder %s115, %s116
      %p125 = scmp.eq.s32.totalorder %s37, 0
      %p126 = por %p124, %p125
      %p127 = scmp.ne.s32.totalorder %s115, %s116
      %p128 = scmp.eq.s32.totalorder %s38, 1
      %p129 = por %p127, %p128
      %p131 = scmp.ne.s32.totalorder %s116, %s130
      %p132 = scmp.eq.s32.totalorder %s38, 0
      %p133 = por %p131, %p132
      %s135 = sadd.s32 %s134, 1
      %p138 = scmp.eq.s32.totalorder %s32, 1
      %p139 = scmp.ne.s32.totalorder %s134, %s136
      %p140 = scmp.eq.s32.totalorder %s32, 0
      %p141 = por %p139, %p140
      %p142 = scmp.ne.s32.totalorder %s134, %s136
      %p143 = scmp.eq.s32.totalorder %s37, 1
      %p144 = por %p142, %p143
      %p145 = scmp.ne.s32.totalorder %s136, %s137
      %p146 = scmp.eq.s32.totalorder %s37, 0
      %p147 = por %p145, %p146
      %p148 = scmp.ne.s32.totalorder %s136, %s137
      %p149 = scmp.eq.s32.totalorder %s38, 1
      %p150 = por %p148, %p149
      %p152 = scmp.ne.s32.totalorder %s137, %s151
      %p153 = scmp.eq.s32.totalorder %s38, 0
      %p154 = por %p152, %p153
      %s156 = sadd.s32 %s155, 1
      %p159 = scmp.eq.s32.totalorder %s32, 1
      %p160 = scmp.ne.s32.totalorder %s155, %s157
      %p161 = scmp.eq.s32.totalorder %s32, 0
      %p162 = por %p160, %p161
      %p163 = scmp.ne.s32.totalorder %s155, %s157
      %p164 = scmp.eq.s32.totalorder %s37, 1
      %p165 = por %p163, %p164
      %p166 = scmp.ne.s32.totalorder %s157, %s158
      %p167 = scmp.eq.s32.totalorder %s37, 0
      %p168 = por %p166, %p167
      %p169 = scmp.ne.s32.totalorder %s157, %s158
      %p170 = scmp.eq.s32.totalorder %s38, 1
      %p171 = por %p169, %p170
      %p173 = scmp.ne.s32.totalorder %s158, %s172
      %p174 = scmp.eq.s32.totalorder %s38, 0
      %p175 = por %p173, %p174
      %s177 = sadd.s32 %s176, 1
      %p180 = scmp.eq.s32.totalorder %s32, 1
      %p181 = scmp.ne.s32.totalorder %s176, %s178
      %p182 = scmp.eq.s32.totalorder %s32, 0
      %p183 = por %p181, %p182
      %p184 = scmp.ne.s32.totalorder %s176, %s178
      %p185 = scmp.eq.s32.totalorder %s37, 1
      %p186 = por %p184, %p185
      %p187 = scmp.ne.s32.totalorder %s178, %s179
      %p188 = scmp.eq.s32.totalorder %s37, 0
      %p189 = por %p187, %p188
      %p190 = scmp.ne.s32.totalorder %s178, %s179
      %p191 = scmp.eq.s32.totalorder %s38, 1
      %p192 = por %p190, %p191
      %p194 = scmp.ne.s32.totalorder %s179, %s193
      %p195 = scmp.eq.s32.totalorder %s38, 0
      %p196 = por %p194, %p195
      %s198 = sadd.s32 %s197, 1
      %p201 = scmp.eq.s32.totalorder %s32, 1
      %p202 = scmp.ne.s32.totalorder %s197, %s199
      %p203 = scmp.eq.s32.totalorder %s32, 0
      %p204 = por %p202, %p203
      %p205 = scmp.ne.s32.totalorder %s197, %s199
      %p206 = scmp.eq.s32.totalorder %s37, 1
      %p207 = por %p205, %p206
      %p208 = scmp.ne.s32.totalorder %s199, %s200
      %p209 = scmp.eq.s32.totalorder %s37, 0
      %p210 = por %p208, %p209
      %p211 = scmp.ne.s32.totalorder %s199, %s200
      %p212 = scmp.eq.s32.totalorder %s38, 1
      %p213 = por %p211, %p212
      %p215 = scmp.ne.s32.totalorder %s200, %s214
      %p216 = scmp.eq.s32.totalorder %s38, 0
      %p217 = por %p215, %p216
      %s219 = sadd.s32 %s218, 1
      %p222 = scmp.eq.s32.totalorder %s32, 1
      %p223 = scmp.ne.s32.totalorder %s218, %s220
      %p224 = scmp.eq.s32.totalorder %s32, 0
      %p225 = por %p223, %p224
      %p226 = scmp.ne.s32.totalorder %s218, %s220
      %p227 = scmp.eq.s32.totalorder %s37, 1
      %p228 = por %p226, %p227
      %p229 = scmp.ne.s32.totalorder %s220, %s221
      %p230 = scmp.eq.s32.totalorder %s37, 0
      %p231 = por %p229, %p230
      %p232 = scmp.ne.s32.totalorder %s220, %s221
      %p233 = scmp.eq.s32.totalorder %s38, 1
      %p234 = por %p232, %p233
      %p236 = scmp.ne.s32.totalorder %s221, %s235
      %p237 = scmp.eq.s32.totalorder %s38, 0
      %p238 = por %p236, %p237
      %s240 = sadd.s32 %s239, 1
      %p243 = scmp.eq.s32.totalorder %s32, 1
      %p244 = scmp.ne.s32.totalorder %s239, %s241
      %p245 = scmp.eq.s32.totalorder %s32, 0
      %p246 = por %p244, %p245
      %p247 = scmp.ne.s32.totalorder %s239, %s241
      %p248 = scmp.eq.s32.totalorder %s37, 1
      %p249 = por %p247, %p248
      %p250 = scmp.ne.s32.totalorder %s241, %s242
      %p251 = scmp.eq.s32.totalorder %s37, 0
      %p252 = por %p250, %p251
      %p253 = scmp.ne.s32.totalorder %s241, %s242
      %p254 = scmp.eq.s32.totalorder %s38, 1
      %p255 = por %p253, %p254
      %p257 = scmp.ne.s32.totalorder %s242, %s256
      %p258 = scmp.eq.s32.totalorder %s38, 0
      %p259 = por %p257, %p258
      %s261 = sadd.s32 %s260, 1
      %p264 = scmp.eq.s32.totalorder %s32, 1
      %p265 = scmp.ne.s32.totalorder %s260, %s262
      %p266 = scmp.eq.s32.totalorder %s32, 0
      %p267 = por %p265, %p266
      %p268 = scmp.ne.s32.totalorder %s260, %s262
      %p269 = scmp.eq.s32.totalorder %s37, 1
      %p270 = por %p268, %p269
      %p271 = scmp.ne.s32.totalorder %s262, %s263
      %p272 = scmp.eq.s32.totalorder %s37, 0
      %p273 = por %p271, %p272
      %p274 = scmp.ne.s32.totalorder %s262, %s263
      %p275 = scmp.eq.s32.totalorder %s38, 1
      %p276 = por %p274, %p275
      %p278 = scmp.ne.s32.totalorder %s263, %s277
      %p279 = scmp.eq.s32.totalorder %s38, 0
      %p280 = por %p278, %p279
      %s282 = sadd.s32 %s281, 1
      %p285 = scmp.eq.s32.totalorder %s32, 1
      %p286 = scmp.ne.s32.totalorder %s281, %s283
      %p287 = scmp.eq.s32.totalorder %s32, 0
      %p288 = por %p286, %p287
      %p289 = scmp.ne.s32.totalorder %s281, %s283
      %p290 = scmp.eq.s32.totalorder %s37, 1
      %p291 = por %p289, %p290
      %p292 = scmp.ne.s32.totalorder %s283, %s284
      %p293 = scmp.eq.s32.totalorder %s37, 0
      %p294 = por %p292, %p293
      %p295 = scmp.ne.s32.totalorder %s283, %s284
      %p296 = scmp.eq.s32.totalorder %s38, 1
      %p297 = por %p295, %p296
      %p299 = scmp.ne.s32.totalorder %s284, %s298
      %p300 = scmp.eq.s32.totalorder %s38, 0
      %p301 = por %p299, %p300
      %s303 = sadd.s32 %s302, 1
      %p306 = scmp.eq.s32.totalorder %s32, 1
      %p307 = scmp.ne.s32.totalorder %s302, %s304
      %p308 = scmp.eq.s32.totalorder %s32, 0
      %p309 = por %p307, %p308
      %p310 = scmp.ne.s32.totalorder %s302, %s304
      %p311 = scmp.eq.s32.totalorder %s37, 1
      %p312 = por %p310, %p311
      %p313 = scmp.ne.s32.totalorder %s304, %s305
      %p314 = scmp.eq.s32.totalorder %s37, 0
      %p315 = por %p313, %p314
      %p316 = scmp.ne.s32.totalorder %s304, %s305
      %p317 = scmp.eq.s32.totalorder %s38, 1
      %p318 = por %p316, %p317
      %p320 = scmp.ne.s32.totalorder %s305, %s319
      %p321 = scmp.eq.s32.totalorder %s38, 0
      %p322 = por %p320, %p321
      %s324 = sadd.s32 %s323, 1
      %p327 = scmp.eq.s32.totalorder %s32, 1
      %p328 = scmp.ne.s32.totalorder %s323, %s325
      %p329 = scmp.eq.s32.totalorder %s32, 0
      %p330 = por %p328, %p329
      %p331 = scmp.ne.s32.totalorder %s323, %s325
      %p332 = scmp.eq.s32.totalorder %s37, 1
      %p333 = por %p331, %p332
      %p334 = scmp.ne.s32.totalorder %s325, %s326
      %p335 = scmp.eq.s32.totalorder %s37, 0
      %p336 = por %p334, %p335
      %p337 = scmp.ne.s32.totalorder %s325, %s326
      %p338 = scmp.eq.s32.totalorder %s38, 1
      %p339 = por %p337, %p338
      %p341 = scmp.ne.s32.totalorder %s326, %s340
      %p342 = scmp.eq.s32.totalorder %s38, 0
      %p343 = por %p341, %p342
      %s344 = ssub.s32 %s32, %s39
      %p345 = scmp.eq.s32.totalorder %s344, 0
      %s347 = sadd.s32 %s346, 1
      %s348 = scalar_select %p345, %s346, %s347
      %p351 = pneg %p345
      %p352 = scmp.eq.s32.totalorder %s32, 1
      %p353 = por %p351, %p352
      %p354 = scmp.ne.s32.totalorder %s346, %s349
      %p355 = scmp.eq.s32.totalorder %s32, 0
      %p356 = por %p354, %p355
      %p357 = scmp.ne.s32.totalorder %s346, %s349
      %p358 = scmp.eq.s32.totalorder %s37, 1
      %p359 = por %p357, %p358
      %p360 = scmp.ne.s32.totalorder %s349, %s350
      %p361 = scmp.eq.s32.totalorder %s37, 0
      %p362 = por %p360, %p361
      %p363 = scmp.ne.s32.totalorder %s349, %s350
      %p364 = scmp.eq.s32.totalorder %s38, 1
      %p365 = por %p363, %p364
      %p367 = scmp.ne.s32.totalorder %s350, %s366
      %p368 = scmp.eq.s32.totalorder %s38, 0
      %p369 = por %p367, %p368
      %p370 = scmp.le.s32.totalorder 1, %s32
      %p371 = scmp.lt.s32.totalorder %s32, 3
      %p372 = pnand %p370, %p371
      %p373 = pneg %p372
      // Predicated region
      $region9: #{tpu_custom_call.1} parent=5 // pred_check
        _
      $region10: #{tpu_custom_call.1} parent=5 // pred_check_branch
        %375 = sbr.rel (%p372) target = $region12
      $region11: #{tpu_custom_call.1} parent=5 // pred_region
        %s376 = ssub.s32 %s32, 1
        // Predicated region
        $region13: #{tpu_custom_call.1} parent=11 // pred_check
          %p377 = pneg %p105
        $region14: #{tpu_custom_call.1} parent=11 // pred_check_branch
          %379 = sbr.rel (%p377) target = $region16
        $region15: #{tpu_custom_call.1} parent=11 // pred_region
          %s381 = ssub.s32 16, 16
          %382 = vsyncadd [#allocation6], %s381
          %s384 = sshll.u32 [#allocation7], 4
          %s385 = int_to_ptr.vmem [resolvable:$true] %s384
          %387 = dma.hbm_to_vmem [thread:$0]  %s2, 16, %s385, [#allocation6]
        $region16: #{tpu_custom_call.1} parent=11 // pred_fallthru
          _
        // Predicated region
        $region17: #{tpu_custom_call.1} parent=11 // pred_check
          %p388 = pneg %p126
        $region18: #{tpu_custom_call.1} parent=11 // pred_check_branch
          %390 = sbr.rel (%p388) target = $region20
        $region19: #{tpu_custom_call.1} parent=11 // pred_region
          %s392 = ssub.s32 16, 16
          %393 = vsyncadd [#allocation9], %s392
          %s395 = sshll.u32 [#allocation8], 4
          %s396 = int_to_ptr.vmem [resolvable:$true] %s395
          %398 = dma.hbm_to_vmem [thread:$0]  %s3, 16, %s396, [#allocation9]
        $region20: #{tpu_custom_call.1} parent=11 // pred_fallthru
          _
        // Predicated region
        $region21: #{tpu_custom_call.1} parent=11 // pred_check
          %p399 = pneg %p147
        $region22: #{tpu_custom_call.1} parent=11 // pred_check_branch
          %401 = sbr.rel (%p399) target = $region24
        $region23: #{tpu_custom_call.1} parent=11 // pred_region
          %s403 = ssub.s32 3072, 3072
          %404 = vsyncadd [#allocation9], %s403
          %s405 = sshll.u32 [#allocation10], 4
          %s406 = int_to_ptr.vmem [resolvable:$true] %s405
          %411 = dma.hbm_to_vmem [thread:$0]  %s4, 3072, %s406, [#allocation9], 192, 192, 12
        $region24: #{tpu_custom_call.1} parent=11 // pred_fallthru
          _
        // Predicated region
        $region25: #{tpu_custom_call.1} parent=11 // pred_check
          %p412 = pneg %p168
        $region26: #{tpu_custom_call.1} parent=11 // pred_check_branch
          %414 = sbr.rel (%p412) target = $region28
        $region27: #{tpu_custom_call.1} parent=11 // pred_region
          _
        $region28: #{tpu_custom_call.1} parent=11 // pred_fallthru
          _
        // Predicated region
        $region29: #{tpu_custom_call.1} parent=11 // pred_check
          %p415 = pneg %p189
        $region30: #{tpu_custom_call.1} parent=11 // pred_check_branch
          %417 = sbr.rel (%p415) target = $region32
        $region31: #{tpu_custom_call.1} parent=11 // pred_region
          %s419 = ssub.s32 1024, 1024
          %420 = vsyncadd [#allocation12], %s419
          %s421 = sshll.u32 [#allocation11], 4
          %s422 = int_to_ptr.vmem [resolvable:$true] %s421
          %427 = dma.hbm_to_vmem [thread:$0]  %s6, 1024, %s422, [#allocation12], 64, 64, 4
        $region32: #{tpu_custom_call.1} parent=11 // pred_fallthru
          _
        // Predicated region
        $region33: #{tpu_custom_call.1} parent=11 // pred_check
          %p428 = pneg %p210
        $region34: #{tpu_custom_call.1} parent=11 // pred_check_branch
          %430 = sbr.rel (%p428) target = $region36
        $region35: #{tpu_custom_call.1} parent=11 // pred_region
          _
        $region36: #{tpu_custom_call.1} parent=11 // pred_fallthru
          _
        // Predicated region
        $region37: #{tpu_custom_call.1} parent=11 // pred_check
          %p431 = pneg %p231
        $region38: #{tpu_custom_call.1} parent=11 // pred_check_branch
          %433 = sbr.rel (%p431) target = $region40
        $region39: #{tpu_custom_call.1} parent=11 // pred_region
          _
        $region40: #{tpu_custom_call.1} parent=11 // pred_fallthru
          _
        // Predicated region
        $region41: #{tpu_custom_call.1} parent=11 // pred_check
          %p434 = pneg %p252
        $region42: #{tpu_custom_call.1} parent=11 // pred_check_branch
          %436 = sbr.rel (%p434) target = $region44
        $region43: #{tpu_custom_call.1} parent=11 // pred_region
          _
        $region44: #{tpu_custom_call.1} parent=11 // pred_fallthru
          _
        // Predicated region
        $region45: #{tpu_custom_call.1} parent=11 // pred_check
          %p437 = pneg %p273
        $region46: #{tpu_custom_call.1} parent=11 // pred_check_branch
          %439 = sbr.rel (%p437) target = $region48
        $region47: #{tpu_custom_call.1} parent=11 // pred_region
          %s441 = ssub.s32 2048, 2048
          %442 = vsyncadd [#allocation12], %s441
          %s443 = sshll.u32 [#allocation13], 4
          %s444 = int_to_ptr.vmem [resolvable:$true] %s443
          %449 = dma.hbm_to_vmem [thread:$0]  %s10, 2048, %s444, [#allocation12], 128, 128, 8
        $region48: #{tpu_custom_call.1} parent=11 // pred_fallthru
          _
        // Predicated region
        $region49: #{tpu_custom_call.1} parent=11 // pred_check
          %p450 = pneg %p294
        $region50: #{tpu_custom_call.1} parent=11 // pred_check_branch
          %452 = sbr.rel (%p450) target = $region52
        $region51: #{tpu_custom_call.1} parent=11 // pred_region
          _
        $region52: #{tpu_custom_call.1} parent=11 // pred_fallthru
          _
        // Predicated region
        $region53: #{tpu_custom_call.1} parent=11 // pred_check
          %p453 = pneg %p315
        $region54: #{tpu_custom_call.1} parent=11 // pred_check_branch
          %455 = sbr.rel (%p453) target = $region56
        $region55: #{tpu_custom_call.1} parent=11 // pred_region
          %s457 = ssub.s32 2048, 2048
          %458 = vsyncadd [#allocation15], %s457
          %s459 = sshll.u32 [#allocation14], 4
          %s460 = int_to_ptr.vmem [resolvable:$true] %s459
          %465 = dma.hbm_to_vmem [thread:$0]  %s12, 2048, %s460, [#allocation15], 64, 64, 4
        $region56: #{tpu_custom_call.1} parent=11 // pred_fallthru
          _
        // Predicated region
        $region57: #{tpu_custom_call.1} parent=11 // pred_check
          %p466 = pneg %p336
        $region58: #{tpu_custom_call.1} parent=11 // pred_check_branch
          %468 = sbr.rel (%p466) target = $region60
        $region59: #{tpu_custom_call.1} parent=11 // pred_region
          _
        $region60: #{tpu_custom_call.1} parent=11 // pred_fallthru
          _
      $region12: #{tpu_custom_call.1} parent=5 // pred_fallthru
        _
      %p469 = scmp.lt.s32.totalorder %s32, 2
      // Predicated region
      $region61: #{tpu_custom_call.1} parent=5 // pred_check
        %p470 = pneg %p469
      $region62: #{tpu_custom_call.1} parent=5 // pred_check_branch
        %472 = sbr.rel (%p470) target = $region64
      $region63: #{tpu_custom_call.1} parent=5 // pred_region
        // Predicated region
        $region65: #{tpu_custom_call.1} parent=63 // pred_check
          %p473 = pneg %p52
        $region66: #{tpu_custom_call.1} parent=63 // pred_check_branch
          %475 = sbr.rel (%p473) target = $region68
        $region67: #{tpu_custom_call.1} parent=63 // pred_region
          %s476 = sand.u32 %s42, 1
          %s477 = scalar_lea.sflag [#allocation3], %s476
          %s478 = sand.u32 %s42, 1
          %s479 = smul.addr %s478, 16
          %s480 = scalar_lea.vmem [#allocation2], %s479
          %s482 = ssub.s32 256, 256
          %483 = vsyncadd %s477, %s482
          %s484 = smul.addr %s32, 2
          %s485 = smul.addr %s484, 128
          %s486 = scalar_lea.hbm %s0, %s485
          %s487 = sshll.u32 %s480, 4
          %s488 = int_to_ptr.vmem [resolvable:$true] %s487
          %493 = dma.hbm_to_vmem [thread:$0]  %s486, 256, %s488, %s477, 128, 128, 8
        $region68: #{tpu_custom_call.1} parent=63 // pred_fallthru
          _
        // Predicated region
        $region69: #{tpu_custom_call.1} parent=63 // pred_check
          %p494 = pneg %p78
        $region70: #{tpu_custom_call.1} parent=63 // pred_check_branch
          %496 = sbr.rel (%p494) target = $region72
        $region71: #{tpu_custom_call.1} parent=63 // pred_region
          %s497 = sand.u32 %s32, 1
          %s498 = scalar_lea.sflag [#allocation6], %s497
          %s499 = sand.u32 %s68, 1
          %s500 = scalar_lea.vmem [#allocation5], %s499
          %s502 = ssub.s32 16, 16
          %503 = vsyncadd %s498, %s502
          %s504 = smul.addr %s32, 16
          %s505 = scalar_lea.hbm %s1, %s504
          %s507 = sshll.u32 %s500, 4
          %s508 = int_to_ptr.vmem [resolvable:$true] %s507
          %510 = dma.hbm_to_vmem [thread:$0]  %s505, 16, %s508, %s498
        $region72: #{tpu_custom_call.1} parent=63 // pred_fallthru
          _
      $region64: #{tpu_custom_call.1} parent=5 // pred_fallthru
        _
      %p511 = scmp.le.s32.totalorder 1, %s32
      %p512 = scmp.lt.s32.totalorder %s32, 3
      %p513 = pnand %p511, %p512
      %p514 = pneg %p513
      // Predicated region
      $region73: #{tpu_custom_call.1} parent=5 // pred_check
        _
      $region74: #{tpu_custom_call.1} parent=5 // pred_check_branch
        %516 = sbr.rel (%p513) target = $region76
      $region75: #{tpu_custom_call.1} parent=5 // pred_region
        %s517 = ssub.s32 %s32, 1
        %s518 = sand.u32 %s45, 1
        %s519 = scalar_lea.sflag [#allocation3], %s518
        %s520 = sand.u32 %s45, 1
        %s521 = smul.addr %s520, 16
        %s522 = scalar_lea.vmem [#allocation2], %s521
        // Predicated region
        $region77: #{tpu_custom_call.1} parent=75 // pred_check
          %p523 = pneg %p58
        $region78: #{tpu_custom_call.1} parent=75 // pred_check_branch
          %525 = sbr.rel (%p523) target = $region80
        $region79: #{tpu_custom_call.1} parent=75 // pred_region
          %526 = dma.done %s519, 256
        $region80: #{tpu_custom_call.1} parent=75 // pred_fallthru
          _
        %s527 = sand.u32 %s37, 1
        %s528 = scalar_lea.sflag [#allocation6], %s527
        %s529 = sand.u32 %s71, 1
        %s530 = scalar_lea.vmem [#allocation5], %s529
        // Predicated region
        $region81: #{tpu_custom_call.1} parent=75 // pred_check
          %p531 = pneg %p84
        $region82: #{tpu_custom_call.1} parent=75 // pred_check_branch
          %533 = sbr.rel (%p531) target = $region84
        $region83: #{tpu_custom_call.1} parent=75 // pred_region
          %534 = dma.done %s528, 16
        $region84: #{tpu_custom_call.1} parent=75 // pred_fallthru
          _
        // Predicated region
        $region85: #{tpu_custom_call.1} parent=75 // pred_check
          %p535 = pneg %p105
        $region86: #{tpu_custom_call.1} parent=75 // pred_check_branch
          %537 = sbr.rel (%p535) target = $region88
        $region87: #{tpu_custom_call.1} parent=75 // pred_region
          %538 = dma.done [#allocation6], 16
        $region88: #{tpu_custom_call.1} parent=75 // pred_fallthru
          _
        // Predicated region
        $region89: #{tpu_custom_call.1} parent=75 // pred_check
          %p539 = pneg %p126
        $region90: #{tpu_custom_call.1} parent=75 // pred_check_branch
          %541 = sbr.rel (%p539) target = $region92
        $region91: #{tpu_custom_call.1} parent=75 // pred_region
          %542 = dma.done [#allocation9], 16
        $region92: #{tpu_custom_call.1} parent=75 // pred_fallthru
          _
        // Predicated region
        $region93: #{tpu_custom_call.1} parent=75 // pred_check
          %p543 = pneg %p147
        $region94: #{tpu_custom_call.1} parent=75 // pred_check_branch
          %545 = sbr.rel (%p543) target = $region96
        $region95: #{tpu_custom_call.1} parent=75 // pred_region
          %546 = dma.done [#allocation9], 3072
        $region96: #{tpu_custom_call.1} parent=75 // pred_fallthru
          _
        // Predicated region
        $region97: #{tpu_custom_call.1} parent=75 // pred_check
          %p547 = pneg %p189
        $region98: #{tpu_custom_call.1} parent=75 // pred_check_branch
          %549 = sbr.rel (%p547) target = $region100
        $region99: #{tpu_custom_call.1} parent=75 // pred_region
          %550 = dma.done [#allocation12], 1024
        $region100: #{tpu_custom_call.1} parent=75 // pred_fallthru
          _
        // Predicated region
        $region101: #{tpu_custom_call.1} parent=75 // pred_check
          %p551 = pneg %p273
        $region102: #{tpu_custom_call.1} parent=75 // pred_check_branch
          %553 = sbr.rel (%p551) target = $region104
        $region103: #{tpu_custom_call.1} parent=75 // pred_region
          %554 = dma.done [#allocation12], 2048
        $region104: #{tpu_custom_call.1} parent=75 // pred_fallthru
          _
        // Predicated region
        $region105: #{tpu_custom_call.1} parent=75 // pred_check
          %p555 = pneg %p315
        $region106: #{tpu_custom_call.1} parent=75 // pred_check_branch
          %557 = sbr.rel (%p555) target = $region108
        $region107: #{tpu_custom_call.1} parent=75 // pred_region
          %558 = dma.done [#allocation15], 2048
        $region108: #{tpu_custom_call.1} parent=75 // pred_fallthru
          _
        %s559 = sand.u32 %s45, 1
        %s560 = scalar_lea.sflag [#allocation3], %s559
        %s561 = sand.u32 %s45, 1
        %s562 = smul.addr %s561, 16
        %s563 = scalar_lea.vmem [#allocation2], %s562
        %p564 = pneg %p58
        %p565 = pneg %p55
        %s566 = sand.u32 %s37, 1
        %s567 = scalar_lea.sflag [#allocation6], %s566
        %s568 = sand.u32 %s71, 1
        %s569 = scalar_lea.vmem [#allocation5], %s568
        %p570 = pneg %p84
        %p571 = pneg %p81
        %p572 = pneg %p105
        %p573 = pneg %p102
        %p574 = pneg %p126
        %p575 = pneg %p123
        %p576 = pneg %p147
        %p577 = pneg %p144
        %p578 = pneg %p168
        %p579 = pneg %p165
        %p580 = pneg %p189
        %p581 = pneg %p186
        %p582 = pneg %p210
        %p583 = pneg %p207
        %p584 = pneg %p231
        %p585 = pneg %p228
        %p586 = pneg %p252
        %p587 = pneg %p249
        %p588 = pneg %p273
        %p589 = pneg %p270
        %p590 = pneg %p294
        %p591 = pneg %p291
        %p592 = pneg %p315
        %p593 = pneg %p312
        %p594 = pneg %p336
        %p595 = pneg %p333
        %p596 = pneg %p362
        %p597 = pneg %p359
        %s598 = sand.u32 %s349, 1
        %s599 = scalar_lea.sflag [#allocation4], %s598
        %s600 = sand.u32 %s349, 1
        %s601 = smul.addr %s600, 16
        %s602 = scalar_lea.vmem [#allocation16], %s601
        %v604 = vld [vmem:[%s522] sm:$0xff]
        %v605 = vld [vmem:[%s522 + $0x8] sm:$0xff]
        %v606 = vld [vmem:[%s530] sm:$0x1]
        %v607 = vld [vmem:[#allocation7] sm:$0x1]
        %v608 = vld [vmem:[#allocation8] sm:$0x1]
        %609 = vadd.xlane.f32.xlu0 %v604
        %v610 = vpop.xlane.xlu0 %609
        %611 = vadd.xlane.f32.xlu0 %v605
        %v612 = vpop.xlane.xlu0 %611
        %v613 = vrcp.pop 128.0
        %v614 = vmul.f32 %v610, %v613
        %v615 = vmul.f32 %v612, %v613
        %v616 = vsub.f32 %v604, %v614
        %v617 = vsub.f32 %v605, %v615
        %v618 = vmul.f32 %v616, %v616
        %v619 = vmul.f32 %v617, %v617
        %620 = vadd.xlane.f32.xlu0 %v618
        %v621 = vpop.xlane.xlu0 %620
        %622 = vadd.xlane.f32.xlu0 %v619
        %v623 = vpop.xlane.xlu0 %622
        %v624 = vmul.f32 %v621, %v613
        %v625 = vmul.f32 %v623, %v613
        %v626 = vadd.f32 %v624, 1e-06
        %v627 = vadd.f32 %v625, 1e-06
        %v628 = vrsqrt.pop %v626
        %v629 = vrsqrt.pop %v627
        %v630 = vmul.f32 %v616, %v628
        %v631 = vmul.f32 %v617, %v629
        %v633 = vlaneseq
        %v634 = vshrl.u32 %v633, 7
        %v635 = vsub.s32 0, %v634
        %v636 = vrot.slane %v607, %v635
        %v638 = vmul.f32 %v630, %v636
        %v639 = vmul.f32 %v631, %v636
        %v641 = vlaneseq
        %v642 = vshrl.u32 %v641, 7
        %v643 = vsub.s32 0, %v642
        %v644 = vrot.slane %v608, %v643
        %v646 = vadd.f32 %v638, %v644
        %v647 = vadd.f32 %v639, %v644
        %v648 = vpack.c.bf16 %v647, %v646
        %v649 = vld [vmem:[#allocation10] sm:$0xff]
        %v650 = vld [vmem:[#allocation10 + $0x8] sm:$0xf]
        %v651 = vld [vmem:[#allocation10 + $0xc] sm:$0xff]
        %v652 = vld [vmem:[#allocation10 + $0x14] sm:$0xf]
        %v653 = vld [vmem:[#allocation10 + $0x18] sm:$0xff]
        %v654 = vld [vmem:[#allocation10 + $0x20] sm:$0xf]
        %v655 = vld [vmem:[#allocation10 + $0x24] sm:$0xff]
        %v656 = vld [vmem:[#allocation10 + $0x2c] sm:$0xf]
        %v657 = vld [vmem:[#allocation10 + $0x30] sm:$0xff]
        %v658 = vld [vmem:[#allocation10 + $0x38] sm:$0xf]
        %v659 = vld [vmem:[#allocation10 + $0x3c] sm:$0xff]
        %v660 = vld [vmem:[#allocation10 + $0x44] sm:$0xf]
        %v661 = vld [vmem:[#allocation10 + $0x48] sm:$0xff]
        %v662 = vld [vmem:[#allocation10 + $0x50] sm:$0xf]
        %v663 = vld [vmem:[#allocation10 + $0x54] sm:$0xff]
        %v664 = vld [vmem:[#allocation10 + $0x5c] sm:$0xf]
        %v665 = vld [vmem:[#allocation10 + $0x60] sm:$0xff]
        %v666 = vld [vmem:[#allocation10 + $0x68] sm:$0xf]
        %v667 = vld [vmem:[#allocation10 + $0x6c] sm:$0xff]
        %v668 = vld [vmem:[#allocation10 + $0x74] sm:$0xf]
        %v669 = vld [vmem:[#allocation10 + $0x78] sm:$0xff]
        %v670 = vld [vmem:[#allocation10 + $0x80] sm:$0xf]
        %v671 = vld [vmem:[#allocation10 + $0x84] sm:$0xff]
        %v672 = vld [vmem:[#allocation10 + $0x8c] sm:$0xf]
        %v673 = vld [vmem:[#allocation10 + $0x90] sm:$0xff]
        %v674 = vld [vmem:[#allocation10 + $0x98] sm:$0xf]
        %v675 = vld [vmem:[#allocation10 + $0x9c] sm:$0xff]
        %v676 = vld [vmem:[#allocation10 + $0xa4] sm:$0xf]
        %v677 = vld [vmem:[#allocation10 + $0xa8] sm:$0xff]
        %v678 = vld [vmem:[#allocation10 + $0xb0] sm:$0xf]
        %v679 = vld [vmem:[#allocation10 + $0xb4] sm:$0xff]
        %v680 = vld [vmem:[#allocation10 + $0xbc] sm:$0xf]
        %v681 = vld [vmem:[%s5] sm:$0x7]
        %v683 = vlaneseq
        %v684 = vshrl.u32 %v683, 7
        %v685 = vsub.s32 0, %v684
        %v686 = vrot.slane %v681, %v685
        %v687 = vlaneseq
        %v688 = vshrl.u32 %v687, 7
        %v689 = vsub.s32 1, %v688
        %v690 = vrot.slane %v681, %v689
        %v691 = vlaneseq
        %v692 = vshrl.u32 %v691, 7
        %v693 = vsub.s32 2, %v692
        %v694 = vrot.slane %v681, %v693
        %v730 = vunpack.c.l.b16 %v649
        %v731 = vunpack.c.h.b16 %v649
        %v732 = vunpack.c.l.b16 %v650
        %v733 = vunpack.c.l.b16 %v651
        %v734 = vunpack.c.h.b16 %v651
        %v735 = vunpack.c.l.b16 %v652
        %v736 = vunpack.c.l.b16 %v653
        %v737 = vunpack.c.h.b16 %v653
        %v738 = vunpack.c.l.b16 %v654
        %v739 = vunpack.c.l.b16 %v655
        %v740 = vunpack.c.h.b16 %v655
        %v741 = vunpack.c.l.b16 %v656
        %v742 = vunpack.c.l.b16 %v657
        %v743 = vunpack.c.h.b16 %v657
        %v744 = vunpack.c.l.b16 %v658
        %v745 = vunpack.c.l.b16 %v659
        %v746 = vunpack.c.h.b16 %v659
        %v747 = vunpack.c.l.b16 %v660
        %v748 = vunpack.c.l.b16 %v661
        %v749 = vunpack.c.h.b16 %v661
        %v750 = vunpack.c.l.b16 %v662
        %v751 = vunpack.c.l.b16 %v663
        %v752 = vunpack.c.h.b16 %v663
        %v753 = vunpack.c.l.b16 %v664
        %v754 = vunpack.c.l.b16 %v665
        %v755 = vunpack.c.h.b16 %v665
        %v756 = vunpack.c.l.b16 %v666
        %v757 = vunpack.c.l.b16 %v667
        %v758 = vunpack.c.h.b16 %v667
        %v759 = vunpack.c.l.b16 %v668
        %v760 = vunpack.c.l.b16 %v669
        %v761 = vunpack.c.h.b16 %v669
        %v762 = vunpack.c.l.b16 %v670
        %v763 = vunpack.c.l.b16 %v671
        %v764 = vunpack.c.h.b16 %v671
        %v765 = vunpack.c.l.b16 %v672
        %v766 = vunpack.c.l.b16 %v673
        %v767 = vunpack.c.h.b16 %v673
        %v768 = vunpack.c.l.b16 %v674
        %v769 = vunpack.c.l.b16 %v675
        %v770 = vunpack.c.h.b16 %v675
        %v771 = vunpack.c.l.b16 %v676
        %v772 = vunpack.c.l.b16 %v677
        %v773 = vunpack.c.h.b16 %v677
        %v774 = vunpack.c.l.b16 %v678
        %v775 = vunpack.c.l.b16 %v679
        %v776 = vunpack.c.h.b16 %v679
        %v777 = vunpack.c.l.b16 %v680
        %v778 = vpack.c.b16 %v733, %v730
        %v779 = vpack.c.b16 %v734, %v731
        %v780 = vpack.c.b16 %v735, %v732
        %v781 = vpack.c.b16 %v739, %v736
        %v782 = vpack.c.b16 %v740, %v737
        %v783 = vpack.c.b16 %v741, %v738
        %v784 = vpack.c.b16 %v745, %v742
        %v785 = vpack.c.b16 %v746, %v743
        %v786 = vpack.c.b16 %v747, %v744
        %v787 = vpack.c.b16 %v751, %v748
        %v788 = vpack.c.b16 %v752, %v749
        %v789 = vpack.c.b16 %v753, %v750
        %v790 = vpack.c.b16 %v757, %v754
        %v791 = vpack.c.b16 %v758, %v755
        %v792 = vpack.c.b16 %v759, %v756
        %v793 = vpack.c.b16 %v763, %v760
        %v794 = vpack.c.b16 %v764, %v761
        %v795 = vpack.c.b16 %v765, %v762
        %v796 = vpack.c.b16 %v769, %v766
        %v797 = vpack.c.b16 %v770, %v767
        %v798 = vpack.c.b16 %v771, %v768
        %v799 = vpack.c.b16 %v775, %v772
        %v800 = vpack.c.b16 %v776, %v773
        %v801 = vpack.c.b16 %v777, %v774
        %826 = vmatprep.subr.bf16.mxu0 %v800
        %827 = vmatpush1.bf16.msra.mxu0 %v799
        %828 = vmatprep.subr.bf16.mxu0 %v797
        %829 = vmatpush1.bf16.msra.mxu0 %v796
        %830 = vmatprep.subr.bf16.mxu0 %v794
        %831 = vmatpush1.bf16.msra.mxu0 %v793
        %832 = vmatprep.subr.bf16.mxu0 %v791
        %833 = vmatpush1.bf16.msra.mxu0 %v790
        %834 = vmatprep.subr.bf16.mxu0 %v788
        %835 = vmatpush1.bf16.msra.mxu0 %v787
        %836 = vmatprep.subr.bf16.mxu0 %v785
        %837 = vmatpush1.bf16.msra.mxu0 %v784
        %838 = vmatprep.subr.bf16.mxu0 %v782
        %839 = vmatpush1.bf16.msra.mxu0 %v781
        %840 = vmatprep.subr.bf16.mxu0 %v779
        %841 = vmatpush1.bf16.msra.mxu0 %v778
        %842 = vmatprep.subr.bf16.mxu0 0
        %843 = vmatpush2.bf16.msra.mxu0 0
        %844 = vmatprep.subr.bf16.mxu0 0
        %845 = vmatpush2.bf16.msra.mxu0 0
        %846 = vmatprep.subr.bf16.mxu0 0
        %847 = vmatpush2.bf16.msra.mxu0 0
        %848 = vmatprep.subr.bf16.mxu0 0
        %849 = vmatpush2.bf16.msra.mxu0 0
        %850 = vmatprep.subr.bf16.mxu0 0
        %851 = vmatpush2.bf16.msra.mxu0 0
        %852 = vmatprep.subr.bf16.mxu0 0
        %853 = vmatpush2.bf16.msra.mxu0 0
        %854 = vmatprep.subr.bf16.mxu0 0
        %855 = vmatpush2.bf16.msra.mxu0 0
        %856 = vmatprep.subr.bf16.mxu0 0
        %857 = vmatpush2.bf16.msra.mxu0 0
        %858 = vmatprep.mubr.bf16.mxu0 0
        %859 = vmatmul.mubr.bf16.gmra.mxu0 %v648
        %v860 = vpop.f32.mrf.mxu0
        %v861 = vadd.f32 %v686, %v860
        %v862 = vpop.f32.mrf.mxu0
        %v863 = vadd.f32 %v690, %v862
        %v864 = vpop.f32.mrf.mxu0
        %v865 = vadd.f32 %v686, %v864
        %v866 = vpop.f32.mrf.mxu0
        %v867 = vadd.f32 %v690, %v866
        %868 = vdwg.mxu0
        %869 = vmatprep.subr.bf16.mxu0 0
        %870 = vmatpush1.bf16.msra.mxu0 %v801
        %871 = vmatprep.subr.bf16.mxu0 0
        %872 = vmatpush1.bf16.msra.mxu0 %v798
        %873 = vmatprep.subr.bf16.mxu0 0
        %874 = vmatpush1.bf16.msra.mxu0 %v795
        %875 = vmatprep.subr.bf16.mxu0 0
        %876 = vmatpush1.bf16.msra.mxu0 %v792
        %877 = vmatprep.subr.bf16.mxu0 0
        %878 = vmatpush1.bf16.msra.mxu0 %v789
        %879 = vmatprep.subr.bf16.mxu0 0
        %880 = vmatpush1.bf16.msra.mxu0 %v786
        %881 = vmatprep.subr.bf16.mxu0 0
        %882 = vmatpush1.bf16.msra.mxu0 %v783
        %883 = vmatprep.subr.bf16.mxu0 0
        %884 = vmatpush1.bf16.msra.mxu0 %v780
        %885 = vmatprep.subr.bf16.mxu0 0
        %886 = vmatpush2.bf16.msra.mxu0 0
        %887 = vmatprep.subr.bf16.mxu0 0
        %888 = vmatpush2.bf16.msra.mxu0 0
        %889 = vmatprep.subr.bf16.mxu0 0
        %890 = vmatpush2.bf16.msra.mxu0 0
        %891 = vmatprep.subr.bf16.mxu0 0
        %892 = vmatpush2.bf16.msra.mxu0 0
        %893 = vmatprep.subr.bf16.mxu0 0
        %894 = vmatpush2.bf16.msra.mxu0 0
        %895 = vmatprep.subr.bf16.mxu0 0
        %896 = vmatpush2.bf16.msra.mxu0 0
        %897 = vmatprep.subr.bf16.mxu0 0
        %898 = vmatpush2.bf16.msra.mxu0 0
        %899 = vmatprep.subr.bf16.mxu0 0
        %900 = vmatpush2.bf16.msra.mxu0 0
        %901 = vmatprep.mubr.bf16.mxu0 0
        %902 = vmatmul.mubr.bf16.gmra.mxu0 %v648
        %v903 = vpop.f32.mrf.mxu0
        %v904 = vadd.f32 %v694, %v903
        %v905 = vpop.f32.mrf.mxu0
        %v906 = vpop.f32.mrf.mxu0
        %v907 = vadd.f32 %v694, %v906
        %v908 = vpop.f32.mrf.mxu0
        %909 = vdwg.mxu0
        %v910 = vpack.c.bf16 %v865, %v861
        %v911 = vpack.c.bf16 %v867, %v863
        %v912 = vpack.c.bf16 %v907, %v904
        %v914 = vlaneseq
        %v915 = vshrl.u32 %v914, 7
        %v916 = vsub.s32 0, %v915
        %v917 = vrot.slane %v606, %v916
        %vm919 = vcmask 261120
        %v921 = vsel %vm919, %v910, 0
        %v924 = vsel %vm919, %v911, 0
        %926 = vmatprep.subr.bf16.mxu0 0
        %927 = vmatpush1.bf16.xpose.msra.mxu0 0
        %928 = vmatprep.subr.bf16.mxu0 0
        %929 = vmatpush1.bf16.xpose.msra.mxu0 0
        %930 = vmatprep.subr.bf16.mxu0 0
        %931 = vmatpush1.bf16.xpose.msra.mxu0 0
        %932 = vmatprep.subr.bf16.mxu0 0
        %933 = vmatpush1.bf16.xpose.msra.mxu0 0
        %934 = vmatprep.subr.bf16.mxu0 0
        %935 = vmatpush1.bf16.xpose.msra.mxu0 0
        %936 = vmatprep.subr.bf16.mxu0 0
        %937 = vmatpush1.bf16.xpose.msra.mxu0 0
        %938 = vmatprep.subr.bf16.mxu0 0
        %939 = vmatpush1.bf16.xpose.msra.mxu0 0
        %940 = vmatprep.subr.bf16.mxu0 0
        %941 = vmatpush1.bf16.xpose.msra.mxu0 %v924
        %942 = vmatprep.subr.bf16.mxu0 0
        %943 = vmatpush2.bf16.xpose.msra.mxu0 0
        %944 = vmatprep.subr.bf16.mxu0 0
        %945 = vmatpush2.bf16.xpose.msra.mxu0 0
        %946 = vmatprep.subr.bf16.mxu0 0
        %947 = vmatpush2.bf16.xpose.msra.mxu0 0
        %948 = vmatprep.subr.bf16.mxu0 0
        %949 = vmatpush2.bf16.xpose.msra.mxu0 0
        %950 = vmatprep.subr.bf16.mxu0 0
        %951 = vmatpush2.bf16.xpose.msra.mxu0 0
        %952 = vmatprep.subr.bf16.mxu0 0
        %953 = vmatpush2.bf16.xpose.msra.mxu0 0
        %954 = vmatprep.subr.bf16.mxu0 0
        %955 = vmatpush2.bf16.xpose.msra.mxu0 0
        %956 = vmatprep.subr.bf16.mxu0 0
        %957 = vmatpush2.bf16.xpose.msra.mxu0 0
        %958 = vmatprep.mubr.bf16.mxu0 0
        %959 = vmatmul.mubr.bf16.gmra.mxu0 %v921
        %v960 = vpop.f32.mrf.mxu0
        %v961 = vadd.f32 %v917, %v960
        %v962 = vpop.f32.mrf.mxu0
        %v963 = vpop.f32.mrf.mxu0
        %v964 = vadd.f32 %v917, %v963
        %v965 = vpop.f32.mrf.mxu0
        %966 = vdwg.mxu0
        %vm967 = vcmask 130048
        %v968 = vsel %vm967, %v961, -inf
        %969 = vmax.xlane.f32.xlu0 %v968
        %v970 = vpop.xlane.xlu0 %969
        %v971 = vsel %vm967, %v964, -inf
        %972 = vmax.xlane.f32.xlu0 %v971
        %v973 = vpop.xlane.xlu0 %972
        %v974 = vsub.f32 %v961, %v970
        %v975 = vsub.f32 %v964, %v973
        %v976 = vmul.f32 %v974, 1.442695
        %v977 = vpow.pop %v976
        %v978 = vmul.f32 %v975, 1.442695
        %v979 = vpow.pop %v978
        %v980 = vsel %vm967, %v977, 0.0
        %981 = vadd.xlane.f32.xlu0 %v980
        %v982 = vpop.xlane.xlu0 %981
        %v983 = vsel %vm967, %v979, 0.0
        %984 = vadd.xlane.f32.xlu0 %v983
        %v985 = vpop.xlane.xlu0 %984
        %v986 = vrcp.pop %v982
        %v987 = vrcp.pop %v985
        %v988 = vmul.f32 %v977, %v986
        %v989 = vmul.f32 %v979, %v987
        %v990 = vpack.c.bf16 %v989, %v988
        %v992 = vsel %vm967, %v990, 0
        %994 = vmatprep.subr.bf16.mxu0 0
        %995 = vmatpush1.bf16.msra.mxu0 0
        %996 = vmatprep.subr.bf16.mxu0 0
        %997 = vmatpush1.bf16.msra.mxu0 0
        %998 = vmatprep.subr.bf16.mxu0 0
        %999 = vmatpush1.bf16.msra.mxu0 0
        %1000 = vmatprep.subr.bf16.mxu0 0
        %1001 = vmatpush1.bf16.msra.mxu0 0
        %1002 = vmatprep.subr.bf16.mxu0 0
        %1003 = vmatpush1.bf16.msra.mxu0 0
        %1004 = vmatprep.subr.bf16.mxu0 0
        %1005 = vmatpush1.bf16.msra.mxu0 0
        %1006 = vmatprep.subr.bf16.mxu0 0
        %1007 = vmatpush1.bf16.msra.mxu0 0
        %1008 = vmatprep.subr.bf16.mxu0 0
        %1009 = vmatpush1.bf16.msra.mxu0 %v912
        %1010 = vmatprep.subr.bf16.mxu0 0
        %1011 = vmatpush2.bf16.msra.mxu0 0
        %1012 = vmatprep.subr.bf16.mxu0 0
        %1013 = vmatpush2.bf16.msra.mxu0 0
        %1014 = vmatprep.subr.bf16.mxu0 0
        %1015 = vmatpush2.bf16.msra.mxu0 0
        %1016 = vmatprep.subr.bf16.mxu0 0
        %1017 = vmatpush2.bf16.msra.mxu0 0
        %1018 = vmatprep.subr.bf16.mxu0 0
        %1019 = vmatpush2.bf16.msra.mxu0 0
        %1020 = vmatprep.subr.bf16.mxu0 0
        %1021 = vmatpush2.bf16.msra.mxu0 0
        %1022 = vmatprep.subr.bf16.mxu0 0
        %1023 = vmatpush2.bf16.msra.mxu0 0
        %1024 = vmatprep.subr.bf16.mxu0 0
        %1025 = vmatpush2.bf16.msra.mxu0 0
        %1026 = vmatprep.mubr.bf16.mxu0 0
        %1027 = vmatmul.mubr.bf16.gmra.mxu0 %v992
        %v1028 = vpop.f32.mrf.mxu0
        %v1029 = vadd.f32 0.0, %v1028
        %v1030 = vpop.f32.mrf.mxu0
        %v1031 = vpop.f32.mrf.mxu0
        %v1032 = vadd.f32 0.0, %v1031
        %v1033 = vpop.f32.mrf.mxu0
        %1034 = vdwg.mxu0
        %1036 = vrot.lane.b32.xlu0 %v910, 96
        %v1037 = vpop.permute.xlu0 %1036
        %1039 = vrot.lane.b32.xlu0 %v911, 96
        %v1040 = vpop.permute.xlu0 %1039
        %v1042 = vsel %vm919, %v1037, 0
        %v1045 = vsel %vm919, %v1040, 0
        %1047 = vmatprep.subr.bf16.mxu0 0
        %1048 = vmatpush1.bf16.xpose.msra.mxu0 0
        %1049 = vmatprep.subr.bf16.mxu0 0
        %1050 = vmatpush1.bf16.xpose.msra.mxu0 0
        %1051 = vmatprep.subr.bf16.mxu0 0
        %1052 = vmatpush1.bf16.xpose.msra.mxu0 0
        %1053 = vmatprep.subr.bf16.mxu0 0
        %1054 = vmatpush1.bf16.xpose.msra.mxu0 0
        %1055 = vmatprep.subr.bf16.mxu0 0
        %1056 = vmatpush1.bf16.xpose.msra.mxu0 0
        %1057 = vmatprep.subr.bf16.mxu0 0
        %1058 = vmatpush1.bf16.xpose.msra.mxu0 0
        %1059 = vmatprep.subr.bf16.mxu0 0
        %1060 = vmatpush1.bf16.xpose.msra.mxu0 0
        %1061 = vmatprep.subr.bf16.mxu0 0
        %1062 = vmatpush1.bf16.xpose.msra.mxu0 %v1045
        %1063 = vmatprep.subr.bf16.mxu0 0
        %1064 = vmatpush2.bf16.xpose.msra.mxu0 0
        %1065 = vmatprep.subr.bf16.mxu0 0
        %1066 = vmatpush2.bf16.xpose.msra.mxu0 0
        %1067 = vmatprep.subr.bf16.mxu0 0
        %1068 = vmatpush2.bf16.xpose.msra.mxu0 0
        %1069 = vmatprep.subr.bf16.mxu0 0
        %1070 = vmatpush2.bf16.xpose.msra.mxu0 0
        %1071 = vmatprep.subr.bf16.mxu0 0
        %1072 = vmatpush2.bf16.xpose.msra.mxu0 0
        %1073 = vmatprep.subr.bf16.mxu0 0
        %1074 = vmatpush2.bf16.xpose.msra.mxu0 0
        %1075 = vmatprep.subr.bf16.mxu0 0
        %1076 = vmatpush2.bf16.xpose.msra.mxu0 0
        %1077 = vmatprep.subr.bf16.mxu0 0
        %1078 = vmatpush2.bf16.xpose.msra.mxu0 0
        %1079 = vmatprep.mubr.bf16.mxu0 0
        %1080 = vmatmul.mubr.bf16.gmra.mxu0 %v1042
        %v1081 = vpop.f32.mrf.mxu0
        %v1082 = vadd.f32 %v917, %v1081
        %v1083 = vpop.f32.mrf.mxu0
        %v1084 = vpop.f32.mrf.mxu0
        %v1085 = vadd.f32 %v917, %v1084
        %v1086 = vpop.f32.mrf.mxu0
        %1087 = vdwg.mxu0
        %v1088 = vsel %vm967, %v1082, -inf
        %1089 = vmax.xlane.f32.xlu0 %v1088
        %v1090 = vpop.xlane.xlu0 %1089
        %v1091 = vsel %vm967, %v1085, -inf
        %1092 = vmax.xlane.f32.xlu0 %v1091
        %v1093 = vpop.xlane.xlu0 %1092
        %v1094 = vsub.f32 %v1082, %v1090
        %v1095 = vsub.f32 %v1085, %v1093
        %v1096 = vmul.f32 %v1094, 1.442695
        %v1097 = vpow.pop %v1096
        %v1098 = vmul.f32 %v1095, 1.442695
        %v1099 = vpow.pop %v1098
        %v1100 = vsel %vm967, %v1097, 0.0
        %1101 = vadd.xlane.f32.xlu0 %v1100
        %v1102 = vpop.xlane.xlu0 %1101
        %v1103 = vsel %vm967, %v1099, 0.0
        %1104 = vadd.xlane.f32.xlu0 %v1103
        %v1105 = vpop.xlane.xlu0 %1104
        %v1106 = vrcp.pop %v1102
        %v1107 = vrcp.pop %v1105
        %v1108 = vmul.f32 %v1097, %v1106
        %v1109 = vmul.f32 %v1099, %v1107
        %v1110 = vpack.c.bf16 %v1109, %v1108
        %1112 = vrot.lane.b32.xlu0 %v912, 96
        %v1113 = vpop.permute.xlu0 %1112
        %v1116 = vsel %vm967, %v1110, 0
        %1118 = vmatprep.subr.bf16.mxu0 0
        %1119 = vmatpush1.bf16.msra.mxu0 0
        %1120 = vmatprep.subr.bf16.mxu0 0
        %1121 = vmatpush1.bf16.msra.mxu0 0
        %1122 = vmatprep.subr.bf16.mxu0 0
        %1123 = vmatpush1.bf16.msra.mxu0 0
        %1124 = vmatprep.subr.bf16.mxu0 0
        %1125 = vmatpush1.bf16.msra.mxu0 0
        %1126 = vmatprep.subr.bf16.mxu0 0
        %1127 = vmatpush1.bf16.msra.mxu0 0
        %1128 = vmatprep.subr.bf16.mxu0 0
        %1129 = vmatpush1.bf16.msra.mxu0 0
        %1130 = vmatprep.subr.bf16.mxu0 0
        %1131 = vmatpush1.bf16.msra.mxu0 0
        %1132 = vmatprep.subr.bf16.mxu0 0
        %1133 = vmatpush1.bf16.msra.mxu0 %v1113
        %1134 = vmatprep.subr.bf16.mxu0 0
        %1135 = vmatpush2.bf16.msra.mxu0 0
        %1136 = vmatprep.subr.bf16.mxu0 0
        %1137 = vmatpush2.bf16.msra.mxu0 0
        %1138 = vmatprep.subr.bf16.mxu0 0
        %1139 = vmatpush2.bf16.msra.mxu0 0
        %1140 = vmatprep.subr.bf16.mxu0 0
        %1141 = vmatpush2.bf16.msra.mxu0 0
        %1142 = vmatprep.subr.bf16.mxu0 0
        %1143 = vmatpush2.bf16.msra.mxu0 0
        %1144 = vmatprep.subr.bf16.mxu0 0
        %1145 = vmatpush2.bf16.msra.mxu0 0
        %1146 = vmatprep.subr.bf16.mxu0 0
        %1147 = vmatpush2.bf16.msra.mxu0 0
        %1148 = vmatprep.subr.bf16.mxu0 0
        %1149 = vmatpush2.bf16.msra.mxu0 0
        %1150 = vmatprep.mubr.bf16.mxu0 0
        %1151 = vmatmul.mubr.bf16.gmra.mxu0 %v1116
        %v1152 = vpop.f32.mrf.mxu0
        %v1153 = vadd.f32 0.0, %v1152
        %v1154 = vpop.f32.mrf.mxu0
        %v1155 = vpop.f32.mrf.mxu0
        %v1156 = vadd.f32 0.0, %v1155
        %v1157 = vpop.f32.mrf.mxu0
        %1158 = vdwg.mxu0
        %1159 = vrot.lane.b32.xlu0 %v910, 64
        %v1160 = vpop.permute.xlu0 %1159
        %1161 = vrot.lane.b32.xlu0 %v911, 64
        %v1162 = vpop.permute.xlu0 %1161
        %v1164 = vsel %vm919, %v1160, 0
        %v1167 = vsel %vm919, %v1162, 0
        %1169 = vmatprep.subr.bf16.mxu0 0
        %1170 = vmatpush1.bf16.xpose.msra.mxu0 0
        %1171 = vmatprep.subr.bf16.mxu0 0
        %1172 = vmatpush1.bf16.xpose.msra.mxu0 0
        %1173 = vmatprep.subr.bf16.mxu0 0
        %1174 = vmatpush1.bf16.xpose.msra.mxu0 0
        %1175 = vmatprep.subr.bf16.mxu0 0
        %1176 = vmatpush1.bf16.xpose.msra.mxu0 0
        %1177 = vmatprep.subr.bf16.mxu0 0
        %1178 = vmatpush1.bf16.xpose.msra.mxu0 0
        %1179 = vmatprep.subr.bf16.mxu0 0
        %1180 = vmatpush1.bf16.xpose.msra.mxu0 0
        %1181 = vmatprep.subr.bf16.mxu0 0
        %1182 = vmatpush1.bf16.xpose.msra.mxu0 0
        %1183 = vmatprep.subr.bf16.mxu0 0
        %1184 = vmatpush1.bf16.xpose.msra.mxu0 %v1167
        %1185 = vmatprep.subr.bf16.mxu0 0
        %1186 = vmatpush2.bf16.xpose.msra.mxu0 0
        %1187 = vmatprep.subr.bf16.mxu0 0
        %1188 = vmatpush2.bf16.xpose.msra.mxu0 0
        %1189 = vmatprep.subr.bf16.mxu0 0
        %1190 = vmatpush2.bf16.xpose.msra.mxu0 0
        %1191 = vmatprep.subr.bf16.mxu0 0
        %1192 = vmatpush2.bf16.xpose.msra.mxu0 0
        %1193 = vmatprep.subr.bf16.mxu0 0
        %1194 = vmatpush2.bf16.xpose.msra.mxu0 0
        %1195 = vmatprep.subr.bf16.mxu0 0
        %1196 = vmatpush2.bf16.xpose.msra.mxu0 0
        %1197 = vmatprep.subr.bf16.mxu0 0
        %1198 = vmatpush2.bf16.xpose.msra.mxu0 0
        %1199 = vmatprep.subr.bf16.mxu0 0
        %1200 = vmatpush2.bf16.xpose.msra.mxu0 0
        %1201 = vmatprep.mubr.bf16.mxu0 0
        %1202 = vmatmul.mubr.bf16.gmra.mxu0 %v1164
        %v1203 = vpop.f32.mrf.mxu0
        %v1204 = vadd.f32 %v917, %v1203
        %v1205 = vpop.f32.mrf.mxu0
        %v1206 = vpop.f32.mrf.mxu0
        %v1207 = vadd.f32 %v917, %v1206
        %v1208 = vpop.f32.mrf.mxu0
        %1209 = vdwg.mxu0
        %v1210 = vsel %vm967, %v1204, -inf
        %1211 = vmax.xlane.f32.xlu0 %v1210
        %v1212 = vpop.xlane.xlu0 %1211
        %v1213 = vsel %vm967, %v1207, -inf
        %1214 = vmax.xlane.f32.xlu0 %v1213
        %v1215 = vpop.xlane.xlu0 %1214
        %v1216 = vsub.f32 %v1204, %v1212
        %v1217 = vsub.f32 %v1207, %v1215
        %v1218 = vmul.f32 %v1216, 1.442695
        %v1219 = vpow.pop %v1218
        %v1220 = vmul.f32 %v1217, 1.442695
        %v1221 = vpow.pop %v1220
        %v1222 = vsel %vm967, %v1219, 0.0
        %1223 = vadd.xlane.f32.xlu0 %v1222
        %v1224 = vpop.xlane.xlu0 %1223
        %v1225 = vsel %vm967, %v1221, 0.0
        %1226 = vadd.xlane.f32.xlu0 %v1225
        %v1227 = vpop.xlane.xlu0 %1226
        %v1228 = vrcp.pop %v1224
        %v1229 = vrcp.pop %v1227
        %v1230 = vmul.f32 %v1219, %v1228
        %v1231 = vmul.f32 %v1221, %v1229
        %v1232 = vpack.c.bf16 %v1231, %v1230
        %1233 = vrot.lane.b32.xlu0 %v912, 64
        %v1234 = vpop.permute.xlu0 %1233
        %v1237 = vsel %vm967, %v1232, 0
        %1239 = vmatprep.subr.bf16.mxu0 0
        %1240 = vmatpush1.bf16.msra.mxu0 0
        %1241 = vmatprep.subr.bf16.mxu0 0
        %1242 = vmatpush1.bf16.msra.mxu0 0
        %1243 = vmatprep.subr.bf16.mxu0 0
        %1244 = vmatpush1.bf16.msra.mxu0 0
        %1245 = vmatprep.subr.bf16.mxu0 0
        %1246 = vmatpush1.bf16.msra.mxu0 0
        %1247 = vmatprep.subr.bf16.mxu0 0
        %1248 = vmatpush1.bf16.msra.mxu0 0
        %1249 = vmatprep.subr.bf16.mxu0 0
        %1250 = vmatpush1.bf16.msra.mxu0 0
        %1251 = vmatprep.subr.bf16.mxu0 0
        %1252 = vmatpush1.bf16.msra.mxu0 0
        %1253 = vmatprep.subr.bf16.mxu0 0
        %1254 = vmatpush1.bf16.msra.mxu0 %v1234
        %1255 = vmatprep.subr.bf16.mxu0 0
        %1256 = vmatpush2.bf16.msra.mxu0 0
        %1257 = vmatprep.subr.bf16.mxu0 0
        %1258 = vmatpush2.bf16.msra.mxu0 0
        %1259 = vmatprep.subr.bf16.mxu0 0
        %1260 = vmatpush2.bf16.msra.mxu0 0
        %1261 = vmatprep.subr.bf16.mxu0 0
        %1262 = vmatpush2.bf16.msra.mxu0 0
        %1263 = vmatprep.subr.bf16.mxu0 0
        %1264 = vmatpush2.bf16.msra.mxu0 0
        %1265 = vmatprep.subr.bf16.mxu0 0
        %1266 = vmatpush2.bf16.msra.mxu0 0
        %1267 = vmatprep.subr.bf16.mxu0 0
        %1268 = vmatpush2.bf16.msra.mxu0 0
        %1269 = vmatprep.subr.bf16.mxu0 0
        %1270 = vmatpush2.bf16.msra.mxu0 0
        %1271 = vmatprep.mubr.bf16.mxu0 0
        %1272 = vmatmul.mubr.bf16.gmra.mxu0 %v1237
        %v1273 = vpop.f32.mrf.mxu0
        %v1274 = vadd.f32 0.0, %v1273
        %v1275 = vpop.f32.mrf.mxu0
        %v1276 = vpop.f32.mrf.mxu0
        %v1277 = vadd.f32 0.0, %v1276
        %v1278 = vpop.f32.mrf.mxu0
        %1279 = vdwg.mxu0
        %1280 = vrot.lane.b32.xlu0 %v910, 32
        %v1281 = vpop.permute.xlu0 %1280
        %1282 = vrot.lane.b32.xlu0 %v911, 32
        %v1283 = vpop.permute.xlu0 %1282
        %v1285 = vsel %vm919, %v1281, 0
        %v1288 = vsel %vm919, %v1283, 0
        %1290 = vmatprep.subr.bf16.mxu0 0
        %1291 = vmatpush1.bf16.xpose.msra.mxu0 0
        %1292 = vmatprep.subr.bf16.mxu0 0
        %1293 = vmatpush1.bf16.xpose.msra.mxu0 0
        %1294 = vmatprep.subr.bf16.mxu0 0
        %1295 = vmatpush1.bf16.xpose.msra.mxu0 0
        %1296 = vmatprep.subr.bf16.mxu0 0
        %1297 = vmatpush1.bf16.xpose.msra.mxu0 0
        %1298 = vmatprep.subr.bf16.mxu0 0
        %1299 = vmatpush1.bf16.xpose.msra.mxu0 0
        %1300 = vmatprep.subr.bf16.mxu0 0
        %1301 = vmatpush1.bf16.xpose.msra.mxu0 0
        %1302 = vmatprep.subr.bf16.mxu0 0
        %1303 = vmatpush1.bf16.xpose.msra.mxu0 0
        %1304 = vmatprep.subr.bf16.mxu0 0
        %1305 = vmatpush1.bf16.xpose.msra.mxu0 %v1288
        %1306 = vmatprep.subr.bf16.mxu0 0
        %1307 = vmatpush2.bf16.xpose.msra.mxu0 0
        %1308 = vmatprep.subr.bf16.mxu0 0
        %1309 = vmatpush2.bf16.xpose.msra.mxu0 0
        %1310 = vmatprep.subr.bf16.mxu0 0
        %1311 = vmatpush2.bf16.xpose.msra.mxu0 0
        %1312 = vmatprep.subr.bf16.mxu0 0
        %1313 = vmatpush2.bf16.xpose.msra.mxu0 0
        %1314 = vmatprep.subr.bf16.mxu0 0
        %1315 = vmatpush2.bf16.xpose.msra.mxu0 0
        %1316 = vmatprep.subr.bf16.mxu0 0
        %1317 = vmatpush2.bf16.xpose.msra.mxu0 0
        %1318 = vmatprep.subr.bf16.mxu0 0
        %1319 = vmatpush2.bf16.xpose.msra.mxu0 0
        %1320 = vmatprep.subr.bf16.mxu0 0
        %1321 = vmatpush2.bf16.xpose.msra.mxu0 0
        %1322 = vmatprep.mubr.bf16.mxu0 0
        %1323 = vmatmul.mubr.bf16.gmra.mxu0 %v1285
        %v1324 = vpop.f32.mrf.mxu0
        %v1325 = vadd.f32 %v917, %v1324
        %v1326 = vpop.f32.mrf.mxu0
        %v1327 = vpop.f32.mrf.mxu0
        %v1328 = vadd.f32 %v917, %v1327
        %v1329 = vpop.f32.mrf.mxu0
        %1330 = vdwg.mxu0
        %v1331 = vsel %vm967, %v1325, -inf
        %1332 = vmax.xlane.f32.xlu0 %v1331
        %v1333 = vpop.xlane.xlu0 %1332
        %v1334 = vsel %vm967, %v1328, -inf
        %1335 = vmax.xlane.f32.xlu0 %v1334
        %v1336 = vpop.xlane.xlu0 %1335
        %v1337 = vsub.f32 %v1325, %v1333
        %v1338 = vsub.f32 %v1328, %v1336
        %v1339 = vmul.f32 %v1337, 1.442695
        %v1340 = vpow.pop %v1339
        %v1341 = vmul.f32 %v1338, 1.442695
        %v1342 = vpow.pop %v1341
        %v1343 = vsel %vm967, %v1340, 0.0
        %1344 = vadd.xlane.f32.xlu0 %v1343
        %v1345 = vpop.xlane.xlu0 %1344
        %v1346 = vsel %vm967, %v1342, 0.0
        %1347 = vadd.xlane.f32.xlu0 %v1346
        %v1348 = vpop.xlane.xlu0 %1347
        %v1349 = vrcp.pop %v1345
        %v1350 = vrcp.pop %v1348
        %v1351 = vmul.f32 %v1340, %v1349
        %v1352 = vmul.f32 %v1342, %v1350
        %v1353 = vpack.c.bf16 %v1352, %v1351
        %1354 = vrot.lane.b32.xlu0 %v912, 32
        %v1355 = vpop.permute.xlu0 %1354
        %v1358 = vsel %vm967, %v1353, 0
        %1360 = vmatprep.subr.bf16.mxu0 0
        %1361 = vmatpush1.bf16.msra.mxu0 0
        %1362 = vmatprep.subr.bf16.mxu0 0
        %1363 = vmatpush1.bf16.msra.mxu0 0
        %1364 = vmatprep.subr.bf16.mxu0 0
        %1365 = vmatpush1.bf16.msra.mxu0 0
        %1366 = vmatprep.subr.bf16.mxu0 0
        %1367 = vmatpush1.bf16.msra.mxu0 0
        %1368 = vmatprep.subr.bf16.mxu0 0
        %1369 = vmatpush1.bf16.msra.mxu0 0
        %1370 = vmatprep.subr.bf16.mxu0 0
        %1371 = vmatpush1.bf16.msra.mxu0 0
        %1372 = vmatprep.subr.bf16.mxu0 0
        %1373 = vmatpush1.bf16.msra.mxu0 0
        %1374 = vmatprep.subr.bf16.mxu0 0
        %1375 = vmatpush1.bf16.msra.mxu0 %v1355
        %1376 = vmatprep.subr.bf16.mxu0 0
        %1377 = vmatpush2.bf16.msra.mxu0 0
        %1378 = vmatprep.subr.bf16.mxu0 0
        %1379 = vmatpush2.bf16.msra.mxu0 0
        %1380 = vmatprep.subr.bf16.mxu0 0
        %1381 = vmatpush2.bf16.msra.mxu0 0
        %1382 = vmatprep.subr.bf16.mxu0 0
        %1383 = vmatpush2.bf16.msra.mxu0 0
        %1384 = vmatprep.subr.bf16.mxu0 0
        %1385 = vmatpush2.bf16.msra.mxu0 0
        %1386 = vmatprep.subr.bf16.mxu0 0
        %1387 = vmatpush2.bf16.msra.mxu0 0
        %1388 = vmatprep.subr.bf16.mxu0 0
        %1389 = vmatpush2.bf16.msra.mxu0 0
        %1390 = vmatprep.subr.bf16.mxu0 0
        %1391 = vmatpush2.bf16.msra.mxu0 0
        %1392 = vmatprep.mubr.bf16.mxu0 0
        %1393 = vmatmul.mubr.bf16.gmra.mxu0 %v1358
        %v1394 = vpop.f32.mrf.mxu0
        %v1395 = vadd.f32 0.0, %v1394
        %v1396 = vpop.f32.mrf.mxu0
        %v1397 = vpop.f32.mrf.mxu0
        %v1398 = vadd.f32 0.0, %v1397
        %v1399 = vpop.f32.mrf.mxu0
        %1400 = vdwg.mxu0
        %1403 = vrot.lane.b32.xlu0 %v1153, 32
        %v1404 = vpop.permute.xlu0 %1403
        %1405 = vrot.lane.b32.xlu0 %v1156, 32
        %v1406 = vpop.permute.xlu0 %1405
        %1411 = vrot.lane.b32.xlu0 %v1274, 64
        %v1412 = vpop.permute.xlu0 %1411
        %1413 = vrot.lane.b32.xlu0 %v1277, 64
        %v1414 = vpop.permute.xlu0 %1413
        %1419 = vrot.lane.b32.xlu0 %v1395, 96
        %v1420 = vpop.permute.xlu0 %1419
        %1421 = vrot.lane.b32.xlu0 %v1398, 96
        %v1422 = vpop.permute.xlu0 %1421
        %v1425 = vsel %vm919, %v1029, %v1404
        %v1426 = vsel %vm919, %v1032, %v1406
        %vm1427 = vcmask 523264
        %v1428 = vsel %vm1427, %v1425, %v1412
        %v1429 = vsel %vm1427, %v1426, %v1414
        %vm1430 = vcmask 785408
        %v1431 = vsel %vm1430, %v1428, %v1420
        %v1432 = vsel %vm1430, %v1429, %v1422
        %v1433 = vpack.c.bf16 %v1432, %v1431
        %v1434 = vld [vmem:[#allocation11] sm:$0xf]
        %v1435 = vld [vmem:[#allocation11 + $0x4] sm:$0xf]
        %v1436 = vld [vmem:[#allocation11 + $0x8] sm:$0xf]
        %v1437 = vld [vmem:[#allocation11 + $0xc] sm:$0xf]
        %v1438 = vld [vmem:[#allocation11 + $0x10] sm:$0xf]
        %v1439 = vld [vmem:[#allocation11 + $0x14] sm:$0xf]
        %v1440 = vld [vmem:[#allocation11 + $0x18] sm:$0xf]
        %v1441 = vld [vmem:[#allocation11 + $0x1c] sm:$0xf]
        %v1442 = vld [vmem:[#allocation11 + $0x20] sm:$0xf]
        %v1443 = vld [vmem:[#allocation11 + $0x24] sm:$0xf]
        %v1444 = vld [vmem:[#allocation11 + $0x28] sm:$0xf]
        %v1445 = vld [vmem:[#allocation11 + $0x2c] sm:$0xf]
        %v1446 = vld [vmem:[#allocation11 + $0x30] sm:$0xf]
        %v1447 = vld [vmem:[#allocation11 + $0x34] sm:$0xf]
        %v1448 = vld [vmem:[#allocation11 + $0x38] sm:$0xf]
        %v1449 = vld [vmem:[#allocation11 + $0x3c] sm:$0xf]
        %v1450 = vld [vmem:[%s7] sm:$0x1]
        %v1452 = vlaneseq
        %v1453 = vshrl.u32 %v1452, 7
        %v1454 = vsub.s32 0, %v1453
        %v1455 = vrot.slane %v1450, %v1454
        %v1473 = vunpack.c.l.b16 %v1434
        %v1474 = vunpack.c.l.b16 %v1435
        %v1475 = vunpack.c.l.b16 %v1436
        %v1476 = vunpack.c.l.b16 %v1437
        %v1477 = vunpack.c.l.b16 %v1438
        %v1478 = vunpack.c.l.b16 %v1439
        %v1479 = vunpack.c.l.b16 %v1440
        %v1480 = vunpack.c.l.b16 %v1441
        %v1481 = vunpack.c.l.b16 %v1442
        %v1482 = vunpack.c.l.b16 %v1443
        %v1483 = vunpack.c.l.b16 %v1444
        %v1484 = vunpack.c.l.b16 %v1445
        %v1485 = vunpack.c.l.b16 %v1446
        %v1486 = vunpack.c.l.b16 %v1447
        %v1487 = vunpack.c.l.b16 %v1448
        %v1488 = vunpack.c.l.b16 %v1449
        %v1489 = vpack.c.b16 %v1474, %v1473
        %v1490 = vpack.c.b16 %v1476, %v1475
        %v1491 = vpack.c.b16 %v1478, %v1477
        %v1492 = vpack.c.b16 %v1480, %v1479
        %v1493 = vpack.c.b16 %v1482, %v1481
        %v1494 = vpack.c.b16 %v1484, %v1483
        %v1495 = vpack.c.b16 %v1486, %v1485
        %v1496 = vpack.c.b16 %v1488, %v1487
        %1505 = vmatprep.subr.bf16.mxu0 0
        %1506 = vmatpush1.bf16.msra.mxu0 %v1496
        %1507 = vmatprep.subr.bf16.mxu0 0
        %1508 = vmatpush1.bf16.msra.mxu0 %v1495
        %1509 = vmatprep.subr.bf16.mxu0 0
        %1510 = vmatpush1.bf16.msra.mxu0 %v1494
        %1511 = vmatprep.subr.bf16.mxu0 0
        %1512 = vmatpush1.bf16.msra.mxu0 %v1493
        %1513 = vmatprep.subr.bf16.mxu0 0
        %1514 = vmatpush1.bf16.msra.mxu0 %v1492
        %1515 = vmatprep.subr.bf16.mxu0 0
        %1516 = vmatpush1.bf16.msra.mxu0 %v1491
        %1517 = vmatprep.subr.bf16.mxu0 0
        %1518 = vmatpush1.bf16.msra.mxu0 %v1490
        %1519 = vmatprep.subr.bf16.mxu0 0
        %1520 = vmatpush1.bf16.msra.mxu0 %v1489
        %1521 = vmatprep.subr.bf16.mxu0 0
        %1522 = vmatpush2.bf16.msra.mxu0 0
        %1523 = vmatprep.subr.bf16.mxu0 0
        %1524 = vmatpush2.bf16.msra.mxu0 0
        %1525 = vmatprep.subr.bf16.mxu0 0
        %1526 = vmatpush2.bf16.msra.mxu0 0
        %1527 = vmatprep.subr.bf16.mxu0 0
        %1528 = vmatpush2.bf16.msra.mxu0 0
        %1529 = vmatprep.subr.bf16.mxu0 0
        %1530 = vmatpush2.bf16.msra.mxu0 0
        %1531 = vmatprep.subr.bf16.mxu0 0
        %1532 = vmatpush2.bf16.msra.mxu0 0
        %1533 = vmatprep.subr.bf16.mxu0 0
        %1534 = vmatpush2.bf16.msra.mxu0 0
        %1535 = vmatprep.subr.bf16.mxu0 0
        %1536 = vmatpush2.bf16.msra.mxu0 0
        %1537 = vmatprep.mubr.bf16.mxu0 0
        %1538 = vmatmul.mubr.bf16.gmra.mxu0 %v1433
        %v1539 = vpop.f32.mrf.mxu0
        %v1540 = vadd.f32 %v1455, %v1539
        %v1541 = vpop.f32.mrf.mxu0
        %v1542 = vpop.f32.mrf.mxu0
        %v1543 = vadd.f32 %v1455, %v1542
        %v1544 = vpop.f32.mrf.mxu0
        %1545 = vdwg.mxu0
        %v1546 = vadd.f32 %v1540, %v604
        %v1547 = vadd.f32 %v1543, %v605
        %v1548 = vld [vmem:[%s8] sm:$0x1]
        %v1549 = vld [vmem:[%s9] sm:$0x1]
        %1550 = vadd.xlane.f32.xlu0 %v1546
        %v1551 = vpop.xlane.xlu0 %1550
        %1552 = vadd.xlane.f32.xlu0 %v1547
        %v1553 = vpop.xlane.xlu0 %1552
        %v1554 = vmul.f32 %v1551, %v613
        %v1555 = vmul.f32 %v1553, %v613
        %v1556 = vsub.f32 %v1546, %v1554
        %v1557 = vsub.f32 %v1547, %v1555
        %v1558 = vmul.f32 %v1556, %v1556
        %v1559 = vmul.f32 %v1557, %v1557
        %1560 = vadd.xlane.f32.xlu0 %v1558
        %v1561 = vpop.xlane.xlu0 %1560
        %1562 = vadd.xlane.f32.xlu0 %v1559
        %v1563 = vpop.xlane.xlu0 %1562
        %v1564 = vmul.f32 %v1561, %v613
        %v1565 = vmul.f32 %v1563, %v613
        %v1566 = vadd.f32 %v1564, 1e-06
        %v1567 = vadd.f32 %v1565, 1e-06
        %v1568 = vrsqrt.pop %v1566
        %v1569 = vrsqrt.pop %v1567
        %v1570 = vmul.f32 %v1556, %v1568
        %v1571 = vmul.f32 %v1557, %v1569
        %v1573 = vlaneseq
        %v1574 = vshrl.u32 %v1573, 7
        %v1575 = vsub.s32 0, %v1574
        %v1576 = vrot.slane %v1548, %v1575
        %v1578 = vmul.f32 %v1570, %v1576
        %v1579 = vmul.f32 %v1571, %v1576
        %v1581 = vlaneseq
        %v1582 = vshrl.u32 %v1581, 7
        %v1583 = vsub.s32 0, %v1582
        %v1584 = vrot.slane %v1549, %v1583
        %v1586 = vadd.f32 %v1578, %v1584
        %v1587 = vadd.f32 %v1579, %v1584
        %v1588 = vpack.c.bf16 %v1587, %v1586
        %v1589 = vld [vmem:[#allocation13] sm:$0xff]
        %v1590 = vld [vmem:[#allocation13 + $0x8] sm:$0xff]
        %v1591 = vld [vmem:[#allocation13 + $0x10] sm:$0xff]
        %v1592 = vld [vmem:[#allocation13 + $0x18] sm:$0xff]
        %v1593 = vld [vmem:[#allocation13 + $0x20] sm:$0xff]
        %v1594 = vld [vmem:[#allocation13 + $0x28] sm:$0xff]
        %v1595 = vld [vmem:[#allocation13 + $0x30] sm:$0xff]
        %v1596 = vld [vmem:[#allocation13 + $0x38] sm:$0xff]
        %v1597 = vld [vmem:[#allocation13 + $0x40] sm:$0xff]
        %v1598 = vld [vmem:[#allocation13 + $0x48] sm:$0xff]
        %v1599 = vld [vmem:[#allocation13 + $0x50] sm:$0xff]
        %v1600 = vld [vmem:[#allocation13 + $0x58] sm:$0xff]
        %v1601 = vld [vmem:[#allocation13 + $0x60] sm:$0xff]
        %v1602 = vld [vmem:[#allocation13 + $0x68] sm:$0xff]
        %v1603 = vld [vmem:[#allocation13 + $0x70] sm:$0xff]
        %v1604 = vld [vmem:[#allocation13 + $0x78] sm:$0xff]
        %v1605 = vld [vmem:[%s11] sm:$0x3]
        %v1607 = vlaneseq
        %v1608 = vshrl.u32 %v1607, 7
        %v1609 = vsub.s32 0, %v1608
        %v1610 = vrot.slane %v1605, %v1609
        %v1611 = vlaneseq
        %v1612 = vshrl.u32 %v1611, 7
        %v1613 = vsub.s32 1, %v1612
        %v1614 = vrot.slane %v1605, %v1613
        %v1633 = vunpack.c.l.b16 %v1589
        %v1634 = vunpack.c.h.b16 %v1589
        %v1635 = vunpack.c.l.b16 %v1590
        %v1636 = vunpack.c.h.b16 %v1590
        %v1637 = vunpack.c.l.b16 %v1591
        %v1638 = vunpack.c.h.b16 %v1591
        %v1639 = vunpack.c.l.b16 %v1592
        %v1640 = vunpack.c.h.b16 %v1592
        %v1641 = vunpack.c.l.b16 %v1593
        %v1642 = vunpack.c.h.b16 %v1593
        %v1643 = vunpack.c.l.b16 %v1594
        %v1644 = vunpack.c.h.b16 %v1594
        %v1645 = vunpack.c.l.b16 %v1595
        %v1646 = vunpack.c.h.b16 %v1595
        %v1647 = vunpack.c.l.b16 %v1596
        %v1648 = vunpack.c.h.b16 %v1596
        %v1649 = vunpack.c.l.b16 %v1597
        %v1650 = vunpack.c.h.b16 %v1597
        %v1651 = vunpack.c.l.b16 %v1598
        %v1652 = vunpack.c.h.b16 %v1598
        %v1653 = vunpack.c.l.b16 %v1599
        %v1654 = vunpack.c.h.b16 %v1599
        %v1655 = vunpack.c.l.b16 %v1600
        %v1656 = vunpack.c.h.b16 %v1600
        %v1657 = vunpack.c.l.b16 %v1601
        %v1658 = vunpack.c.h.b16 %v1601
        %v1659 = vunpack.c.l.b16 %v1602
        %v1660 = vunpack.c.h.b16 %v1602
        %v1661 = vunpack.c.l.b16 %v1603
        %v1662 = vunpack.c.h.b16 %v1603
        %v1663 = vunpack.c.l.b16 %v1604
        %v1664 = vunpack.c.h.b16 %v1604
        %v1665 = vpack.c.b16 %v1635, %v1633
        %v1666 = vpack.c.b16 %v1636, %v1634
        %v1667 = vpack.c.b16 %v1639, %v1637
        %v1668 = vpack.c.b16 %v1640, %v1638
        %v1669 = vpack.c.b16 %v1643, %v1641
        %v1670 = vpack.c.b16 %v1644, %v1642
        %v1671 = vpack.c.b16 %v1647, %v1645
        %v1672 = vpack.c.b16 %v1648, %v1646
        %v1673 = vpack.c.b16 %v1651, %v1649
        %v1674 = vpack.c.b16 %v1652, %v1650
        %v1675 = vpack.c.b16 %v1655, %v1653
        %v1676 = vpack.c.b16 %v1656, %v1654
        %v1677 = vpack.c.b16 %v1659, %v1657
        %v1678 = vpack.c.b16 %v1660, %v1658
        %v1679 = vpack.c.b16 %v1663, %v1661
        %v1680 = vpack.c.b16 %v1664, %v1662
        %1697 = vmatprep.subr.bf16.mxu0 %v1680
        %1698 = vmatpush1.bf16.msra.mxu0 %v1679
        %1699 = vmatprep.subr.bf16.mxu0 %v1678
        %1700 = vmatpush1.bf16.msra.mxu0 %v1677
        %1701 = vmatprep.subr.bf16.mxu0 %v1676
        %1702 = vmatpush1.bf16.msra.mxu0 %v1675
        %1703 = vmatprep.subr.bf16.mxu0 %v1674
        %1704 = vmatpush1.bf16.msra.mxu0 %v1673
        %1705 = vmatprep.subr.bf16.mxu0 %v1672
        %1706 = vmatpush1.bf16.msra.mxu0 %v1671
        %1707 = vmatprep.subr.bf16.mxu0 %v1670
        %1708 = vmatpush1.bf16.msra.mxu0 %v1669
        %1709 = vmatprep.subr.bf16.mxu0 %v1668
        %1710 = vmatpush1.bf16.msra.mxu0 %v1667
        %1711 = vmatprep.subr.bf16.mxu0 %v1666
        %1712 = vmatpush1.bf16.msra.mxu0 %v1665
        %1713 = vmatprep.subr.bf16.mxu0 0
        %1714 = vmatpush2.bf16.msra.mxu0 0
        %1715 = vmatprep.subr.bf16.mxu0 0
        %1716 = vmatpush2.bf16.msra.mxu0 0
        %1717 = vmatprep.subr.bf16.mxu0 0
        %1718 = vmatpush2.bf16.msra.mxu0 0
        %1719 = vmatprep.subr.bf16.mxu0 0
        %1720 = vmatpush2.bf16.msra.mxu0 0
        %1721 = vmatprep.subr.bf16.mxu0 0
        %1722 = vmatpush2.bf16.msra.mxu0 0
        %1723 = vmatprep.subr.bf16.mxu0 0
        %1724 = vmatpush2.bf16.msra.mxu0 0
        %1725 = vmatprep.subr.bf16.mxu0 0
        %1726 = vmatpush2.bf16.msra.mxu0 0
        %1727 = vmatprep.subr.bf16.mxu0 0
        %1728 = vmatpush2.bf16.msra.mxu0 0
        %1729 = vmatprep.mubr.bf16.mxu0 0
        %1730 = vmatmul.mubr.bf16.gmra.mxu0 %v1588
        %v1731 = vpop.f32.mrf.mxu0
        %v1732 = vadd.f32 %v1610, %v1731
        %v1733 = vpop.f32.mrf.mxu0
        %v1734 = vadd.f32 %v1614, %v1733
        %v1735 = vpop.f32.mrf.mxu0
        %v1736 = vadd.f32 %v1610, %v1735
        %v1737 = vpop.f32.mrf.mxu0
        %v1738 = vadd.f32 %v1614, %v1737
        %1739 = vdwg.mxu0
        %v1740 = vmax.f32 %v1732, 0.0
        %v1741 = vmax.f32 %v1734, 0.0
        %v1742 = vmax.f32 %v1736, 0.0
        %v1743 = vmax.f32 %v1738, 0.0
        %v1744 = vpack.c.bf16 %v1742, %v1740
        %v1745 = vpack.c.bf16 %v1743, %v1741
        %v1746 = vld [vmem:[#allocation14] sm:$0xf]
        %v1747 = vld [vmem:[#allocation14 + $0x4] sm:$0xf]
        %v1748 = vld [vmem:[#allocation14 + $0x8] sm:$0xf]
        %v1749 = vld [vmem:[#allocation14 + $0xc] sm:$0xf]
        %v1750 = vld [vmem:[#allocation14 + $0x10] sm:$0xf]
        %v1751 = vld [vmem:[#allocation14 + $0x14] sm:$0xf]
        %v1752 = vld [vmem:[#allocation14 + $0x18] sm:$0xf]
        %v1753 = vld [vmem:[#allocation14 + $0x1c] sm:$0xf]
        %v1754 = vld [vmem:[#allocation14 + $0x20] sm:$0xf]
        %v1755 = vld [vmem:[#allocation14 + $0x24] sm:$0xf]
        %v1756 = vld [vmem:[#allocation14 + $0x28] sm:$0xf]
        %v1757 = vld [vmem:[#allocation14 + $0x2c] sm:$0xf]
        %v1758 = vld [vmem:[#allocation14 + $0x30] sm:$0xf]
        %v1759 = vld [vmem:[#allocation14 + $0x34] sm:$0xf]
        %v1760 = vld [vmem:[#allocation14 + $0x38] sm:$0xf]
        %v1761 = vld [vmem:[#allocation14 + $0x3c] sm:$0xf]
        %v1762 = vld [vmem:[#allocation14 + $0x40] sm:$0xf]
        %v1763 = vld [vmem:[#allocation14 + $0x44] sm:$0xf]
        %v1764 = vld [vmem:[#allocation14 + $0x48] sm:$0xf]
        %v1765 = vld [vmem:[#allocation14 + $0x4c] sm:$0xf]
        %v1766 = vld [vmem:[#allocation14 + $0x50] sm:$0xf]
        %v1767 = vld [vmem:[#allocation14 + $0x54] sm:$0xf]
        %v1768 = vld [vmem:[#allocation14 + $0x58] sm:$0xf]
        %v1769 = vld [vmem:[#allocation14 + $0x5c] sm:$0xf]
        %v1770 = vld [vmem:[#allocation14 + $0x60] sm:$0xf]
        %v1771 = vld [vmem:[#allocation14 + $0x64] sm:$0xf]
        %v1772 = vld [vmem:[#allocation14 + $0x68] sm:$0xf]
        %v1773 = vld [vmem:[#allocation14 + $0x6c] sm:$0xf]
        %v1774 = vld [vmem:[#allocation14 + $0x70] sm:$0xf]
        %v1775 = vld [vmem:[#allocation14 + $0x74] sm:$0xf]
        %v1776 = vld [vmem:[#allocation14 + $0x78] sm:$0xf]
        %v1777 = vld [vmem:[#allocation14 + $0x7c] sm:$0xf]
        %v1778 = vld [vmem:[%s13] sm:$0x1]
        %v1780 = vlaneseq
        %v1781 = vshrl.u32 %v1780, 7
        %v1782 = vsub.s32 0, %v1781
        %v1783 = vrot.slane %v1778, %v1782
        %v1817 = vunpack.c.l.b16 %v1746
        %v1818 = vunpack.c.l.b16 %v1747
        %v1819 = vunpack.c.l.b16 %v1748
        %v1820 = vunpack.c.l.b16 %v1749
        %v1821 = vunpack.c.l.b16 %v1750
        %v1822 = vunpack.c.l.b16 %v1751
        %v1823 = vunpack.c.l.b16 %v1752
        %v1824 = vunpack.c.l.b16 %v1753
        %v1825 = vunpack.c.l.b16 %v1754
        %v1826 = vunpack.c.l.b16 %v1755
        %v1827 = vunpack.c.l.b16 %v1756
        %v1828 = vunpack.c.l.b16 %v1757
        %v1829 = vunpack.c.l.b16 %v1758
        %v1830 = vunpack.c.l.b16 %v1759
        %v1831 = vunpack.c.l.b16 %v1760
        %v1832 = vunpack.c.l.b16 %v1761
        %v1833 = vunpack.c.l.b16 %v1762
        %v1834 = vunpack.c.l.b16 %v1763
        %v1835 = vunpack.c.l.b16 %v1764
        %v1836 = vunpack.c.l.b16 %v1765
        %v1837 = vunpack.c.l.b16 %v1766
        %v1838 = vunpack.c.l.b16 %v1767
        %v1839 = vunpack.c.l.b16 %v1768
        %v1840 = vunpack.c.l.b16 %v1769
        %v1841 = vunpack.c.l.b16 %v1770
        %v1842 = vunpack.c.l.b16 %v1771
        %v1843 = vunpack.c.l.b16 %v1772
        %v1844 = vunpack.c.l.b16 %v1773
        %v1845 = vunpack.c.l.b16 %v1774
        %v1846 = vunpack.c.l.b16 %v1775
        %v1847 = vunpack.c.l.b16 %v1776
        %v1848 = vunpack.c.l.b16 %v1777
        %v1849 = vpack.c.b16 %v1818, %v1817
        %v1850 = vpack.c.b16 %v1820, %v1819
        %v1851 = vpack.c.b16 %v1822, %v1821
        %v1852 = vpack.c.b16 %v1824, %v1823
        %v1853 = vpack.c.b16 %v1826, %v1825
        %v1854 = vpack.c.b16 %v1828, %v1827
        %v1855 = vpack.c.b16 %v1830, %v1829
        %v1856 = vpack.c.b16 %v1832, %v1831
        %v1857 = vpack.c.b16 %v1834, %v1833
        %v1858 = vpack.c.b16 %v1836, %v1835
        %v1859 = vpack.c.b16 %v1838, %v1837
        %v1860 = vpack.c.b16 %v1840, %v1839
        %v1861 = vpack.c.b16 %v1842, %v1841
        %v1862 = vpack.c.b16 %v1844, %v1843
        %v1863 = vpack.c.b16 %v1846, %v1845
        %v1864 = vpack.c.b16 %v1848, %v1847
        %1881 = vmatprep.subr.bf16.mxu0 0
        %1882 = vmatpush1.bf16.msra.mxu0 %v1856
        %1883 = vmatprep.subr.bf16.mxu0 0
        %1884 = vmatpush1.bf16.msra.mxu0 %v1855
        %1885 = vmatprep.subr.bf16.mxu0 0
        %1886 = vmatpush1.bf16.msra.mxu0 %v1854
        %1887 = vmatprep.subr.bf16.mxu0 0
        %1888 = vmatpush1.bf16.msra.mxu0 %v1853
        %1889 = vmatprep.subr.bf16.mxu0 0
        %1890 = vmatpush1.bf16.msra.mxu0 %v1852
        %1891 = vmatprep.subr.bf16.mxu0 0
        %1892 = vmatpush1.bf16.msra.mxu0 %v1851
        %1893 = vmatprep.subr.bf16.mxu0 0
        %1894 = vmatpush1.bf16.msra.mxu0 %v1850
        %1895 = vmatprep.subr.bf16.mxu0 0
        %1896 = vmatpush1.bf16.msra.mxu0 %v1849
        %1897 = vmatprep.subr.bf16.mxu0 0
        %1898 = vmatpush2.bf16.msra.mxu0 %v1864
        %1899 = vmatprep.subr.bf16.mxu0 0
        %1900 = vmatpush2.bf16.msra.mxu0 %v1863
        %1901 = vmatprep.subr.bf16.mxu0 0
        %1902 = vmatpush2.bf16.msra.mxu0 %v1862
        %1903 = vmatprep.subr.bf16.mxu0 0
        %1904 = vmatpush2.bf16.msra.mxu0 %v1861
        %1905 = vmatprep.subr.bf16.mxu0 0
        %1906 = vmatpush2.bf16.msra.mxu0 %v1860
        %1907 = vmatprep.subr.bf16.mxu0 0
        %1908 = vmatpush2.bf16.msra.mxu0 %v1859
        %1909 = vmatprep.subr.bf16.mxu0 0
        %1910 = vmatpush2.bf16.msra.mxu0 %v1858
        %1911 = vmatprep.subr.bf16.mxu0 0
        %1912 = vmatpush2.bf16.msra.mxu0 %v1857
        %1913 = vmatprep.mubr.bf16.mxu0 %v1745
        %1914 = vmatmul.mubr.bf16.gmra.mxu0 %v1744
        %v1915 = vpop.f32.mrf.mxu0
        %v1916 = vadd.f32 %v1783, %v1915
        %v1917 = vpop.f32.mrf.mxu0
        %v1918 = vpop.f32.mrf.mxu0
        %v1919 = vadd.f32 %v1783, %v1918
        %v1920 = vpop.f32.mrf.mxu0
        %1921 = vdwg.mxu0
        %v1922 = vadd.f32 %v1916, %v1546
        %v1923 = vadd.f32 %v1919, %v1547
        %1924 = vst [vmem:[%s602] sm:$0xff] %v1922
        %1925 = vst [vmem:[%s602 + $0x8] sm:$0xff] %v1923
        %s1926 = sand.u32 %s349, 1
        %s1927 = scalar_lea.sflag [#allocation4], %s1926
        %s1928 = sand.u32 %s349, 1
        %s1929 = smul.addr %s1928, 16
        %s1930 = scalar_lea.vmem [#allocation16], %s1929
        // Predicated region
        $region109: #{tpu_custom_call.1} parent=75 // pred_check
          %p1931 = pneg %p359
        $region110: #{tpu_custom_call.1} parent=75 // pred_check_branch
          %1933 = sbr.rel (%p1931) target = $region112
        $region111: #{tpu_custom_call.1} parent=75 // pred_region
          %s1935 = ssub.s32 256, 256
          %1936 = vsyncadd %s1927, %s1935
          %s1937 = smul.addr %s37, 2
          %s1938 = smul.addr %s1937, 128
          %s1939 = scalar_lea.hbm %s14, %s1938
          %s1940 = sshll.u32 %s1930, 4
          %s1941 = int_to_ptr.vmem [resolvable:$true] %s1940
          %1946 = dma.vmem_to_hbm [thread:$0]  %s1941, 256, %s1939, %s1927, 128, 128, 8
        $region112: #{tpu_custom_call.1} parent=75 // pred_fallthru
          _
      $region76: #{tpu_custom_call.1} parent=5 // pred_fallthru
        _
      %p1947 = scmp.le.s32.totalorder 2, %s32
      // Predicated region
      $region113: #{tpu_custom_call.1} parent=5 // pred_check
        %p1948 = pneg %p1947
      $region114: #{tpu_custom_call.1} parent=5 // pred_check_branch
        %1950 = sbr.rel (%p1948) target = $region116
      $region115: #{tpu_custom_call.1} parent=5 // pred_region
        %s1951 = ssub.s32 %s32, 2
        // Predicated region
        $region117: #{tpu_custom_call.1} parent=115 // pred_check
          %p1952 = pneg %p365
        $region118: #{tpu_custom_call.1} parent=115 // pred_check_branch
          %1954 = sbr.rel (%p1952) target = $region120
        $region119: #{tpu_custom_call.1} parent=115 // pred_region
          %s1955 = sand.u32 %s350, 1
          %s1956 = scalar_lea.sflag [#allocation4], %s1955
          %s1957 = sand.u32 %s350, 1
          %s1958 = smul.addr %s1957, 16
          %s1959 = scalar_lea.vmem [#allocation16], %s1958
          %1960 = dma.done %s1956, 256
        $region120: #{tpu_custom_call.1} parent=115 // pred_fallthru
          _
      $region116: #{tpu_custom_call.1} parent=5 // pred_fallthru
        _
    $region6: #{tpu_custom_call.1} parent=1 // loop_footer
      %s36 = sadd.s32 1, %s32
    $region7: #{tpu_custom_call.1} parent=1 // loop_footer_branch
      %31 = sbr.rel target = $region3
    $region8: #{tpu_custom_call.1} parent=1 // loop_exit
      _
    %1961 = vsyncpa [#allocation3], 1
    %s1962 = scalar_lea.sflag [#allocation3], 1
    %1963 = vsyncpa %s1962, 1
    %1964 = vsyncpa [#allocation6], 1
    %s1965 = scalar_lea.sflag [#allocation6], 1
    %1966 = vsyncpa %s1965, 1
    %1967 = vsyncpa [#allocation9], 1
    %1968 = vsyncpa [#allocation12], 1
    %1969 = vsyncpa [#allocation15], 1
    %1970 = vsyncpa [#allocation4], 1
    %s1971 = scalar_lea.sflag [#allocation4], 1
    %1972 = vsyncpa %s1971, 1

</llo_original>
